<compile_context>
chip_gen: v5e
topology: v5e:2x2
jax: 0.10.0
libtpu: 0.0.40
codegen_flags: <defaults>
</compile_context>

<pallas_src>
import jax
import jax.numpy as jnp
from jax.experimental import pallas as pl
from jax.experimental.pallas import tpu as pltpu

VERY_NEG_NUMBER = -100000000000.0
_INT_SENTINEL = 2**31 - 1


def _col_to_lane_row(col):
    """Layout-safe (n, 1) -> (1, n) transpose via broadcast/iota/select/reduce.

    Keeps the final output stores lane-dense without relying on an in-kernel
    vector transpose; cost is one (n, n) select + sublane reduce per B tile.
    """
    n = col.shape[0]
    sub = jax.lax.broadcasted_iota(jnp.int32, (n, n), 0)
    lane = jax.lax.broadcasted_iota(jnp.int32, (n, n), 1)
    diag = jnp.where(sub == lane, col, jnp.zeros_like(col))   # (n, n)
    return jnp.sum(diag, axis=0, keepdims=True)               # (1, n)


def _mask_reduce_kernel(values_ref, mask_ref, max_ref, arg_ref, m_scr, a_scr):
    nt = pl.program_id(1)  # N (reduction) axis — innermost, "arbitrary"

    @pl.when(nt == 0)
    def _init():
        m_scr[...] = jnp.full(m_scr.shape, -jnp.inf, jnp.float32)
        a_scr[...] = jnp.zeros(a_scr.shape, jnp.int32)

    vals = values_ref[...]                                    # (tb, tn) f32
    keep = mask_ref[...] != 0                                 # (tb, tn) from int8
    masked = jnp.where(keep, vals, jnp.float32(VERY_NEG_NUMBER))

    tb, tn = masked.shape
    # iota per tile + scalar offset (no per-element index materialized over N).
    lane_idx = jax.lax.broadcasted_iota(jnp.int32, (tb, tn), 1) + nt * tn

    tile_max = jnp.max(masked, axis=-1, keepdims=True)        # (tb, 1)
    cand = jnp.where(masked >= tile_max, lane_idx, jnp.int32(_INT_SENTINEL))
    tile_arg = jnp.min(cand, axis=-1, keepdims=True)          # first max in tile

    better = tile_max > m_scr[...]                            # strict > keeps first
    a_scr[...] = jnp.where(better, tile_arg, a_scr[...])
    m_scr[...] = jnp.where(better, tile_max, m_scr[...])

    @pl.when(nt == pl.num_programs(1) - 1)
    def _finalize():
        # Lane-dense (1, tb) stores instead of (tb, 1) masked partial stores.
        max_ref[...] = _col_to_lane_row(m_scr[...])
        arg_ref[...] = _col_to_lane_row(a_scr[...]).astype(jnp.int32)


def _gather_kernel(action_ref, emb_ref, out_ref):
    del action_ref  # only consumed by the index_map (SMEM scalar prefetch)
    out_ref[...] = emb_ref[...]          # selected (1, E) row -> output row


def _pick_tile(dim, cap):
    t = max(1, min(dim, cap))
    while dim % t:
        t -= 1
    return t


def mask_max_argmax(values, mask_i8, *, max_tile_b=128, max_tile_n=512):
    """values: (B, N) f32; mask_i8: (B, N) int8. Returns ((B,1) f32, (B,1) i32)."""
    B, N = values.shape
    tb = _pick_tile(B, max_tile_b)
    tn = _pick_tile(N, max_tile_n)
    grid = (B // tb, N // tn)

    # VMEM budget per step (double-buffered): 2*(tb*tn*4 + tb*tn*1) + tiny
    # outputs/scratch ~= 0.7 MiB at (128, 512) — comfortably under the 32 MiB
    # scoped limit (v7x: 64 MiB physical / 32 MiB scoped).
    row_max, row_arg = pl.pallas_call(
        _mask_reduce_kernel,
        out_shape=(
            jax.ShapeDtypeStruct((1, B), jnp.float32),
            jax.ShapeDtypeStruct((1, B), jnp.int32),
        ),
        grid_spec=pltpu.PrefetchScalarGridSpec(
            num_scalar_prefetch=0,
            grid=grid,
            in_specs=[
                pl.BlockSpec((tb, tn), lambda b, n: (b, n)),   # values
                pl.BlockSpec((tb, tn), lambda b, n: (b, n)),   # mask (int8)
            ],
            out_specs=[
                pl.BlockSpec((1, tb), lambda b, n: (0, b)),    # max, lane-dense
                pl.BlockSpec((1, tb), lambda b, n: (0, b)),    # argmax, lane-dense
            ],
            scratch_shapes=[
                pltpu.VMEM((tb, 1), jnp.float32),              # running max
                pltpu.VMEM((tb, 1), jnp.int32),                # running argmax
            ],
        ),
        compiler_params=pltpu.CompilerParams(
            dimension_semantics=("parallel", "arbitrary"),
            vmem_limit_bytes=32 * 1024 * 1024,
        ),
    )(values, mask_i8)

    return row_max.reshape(B, 1), row_arg.reshape(B, 1)


def get_node_emb(query_hidden_emb, action):
    """query_hidden_emb: (B, H, E) f32; action: (B,) int. Returns (B, E) f32."""
    B, H, E = query_hidden_emb.shape
    action_i32 = jnp.clip(action.astype(jnp.int32), 0, H - 1)  # no OOB DMA

    return pl.pallas_call(
        _gather_kernel,
        out_shape=jax.ShapeDtypeStruct((B, E), query_hidden_emb.dtype),
        grid_spec=pltpu.PrefetchScalarGridSpec(
            num_scalar_prefetch=1,                 # `action` lives in SMEM
            grid=(B,),
            in_specs=[
                # Squeeze B, block size 1 along H, full E: only the selected
                # (1, E) row is DMA'd per grid step; its index comes from the
                # prefetched action scalar.
                pl.BlockSpec((None, 1, E), lambda b, act: (b, act[b], 0)),
            ],
            out_specs=pl.BlockSpec((1, E), lambda b, act: (b, 0)),
        ),
        compiler_params=pltpu.CompilerParams(
            dimension_semantics=("arbitrary",),
        ),
    )(action_i32, query_hidden_emb)


def base_agent_ops(values, mask, query_hidden_emb, action):
    """Fused BaseAgent helpers.

    values: (B, N) f32; mask: (B, N) int8/bool (preferred) or float;
    query_hidden_emb: (B, H, E) f32; action: (B,) int.
    Returns (mask_max (B,1) f32, mask_argmax (B,1) i32, q_rep (B,E) f32).
    """
    if mask.dtype != jnp.int8:
        # Callers should pass int8/bool directly to avoid this extra HBM pass.
        mask = (mask != 0).astype(jnp.int8)
    m_max, m_arg = mask_max_argmax(values, mask)
    q_rep = get_node_emb(query_hidden_emb, action)
    return m_max, m_arg, q_rep


if __name__ == "__main__":
    key = jax.random.PRNGKey(0)
    k1, k2, k3, k4 = jax.random.split(key, 4)

    # Small shapes that still exercise the tiling: 2 B-tiles x 2 N-tiles.
    B, N, H, E = 256, 1024, 8, 64
    values = jax.random.normal(k1, (B, N), dtype=jnp.float32)
    mask = jax.random.bernoulli(k2, 0.5, (B, N)).astype(jnp.int8)
    mask = mask.at[:, 0].set(1)            # guarantee >=1 valid entry per row
    query_hidden_emb = jax.random.normal(k3, (B, H, E), dtype=jnp.float32)
    action = jax.random.randint(k4, (B,), 0, H, dtype=jnp.int32)

    m_max, m_argmax, q_rep = base_agent_ops(values, mask, query_hidden_emb, action)
    jax.block_until_ready((m_max, m_argmax, q_rep))

    # Reference in plain JAX (same semantics as the torch helpers).
    mask_f = mask.astype(jnp.float32)
    masked_ref = values + (1.0 - mask_f) * VERY_NEG_NUMBER
    ref_max = jnp.max(masked_ref, axis=-1, keepdims=True)
    ref_arg = jnp.argmax(masked_ref, axis=-1).reshape(B, 1).astype(jnp.int32)
    ref_qrep = query_hidden_emb[jnp.arange(B), action, :]

    assert jnp.allclose(m_max, ref_max, atol=1e-5), "mask_max mismatch"
    assert jnp.array_equal(m_argmax, ref_arg), "mask_argmax mismatch"
    assert jnp.allclose(q_rep, ref_qrep, atol=1e-5), "get_node_emb mismatch"

    # TODO(synk): BaseAgent.forward is `pass` and parse_args is host-side
    # config bookkeeping; only the static helper compute paths are kernels.
    print("KERNEL_OK")
</pallas_src>

<mosaic_0001>
module attributes {stable_mosaic.version = 11 : i64} {
  func.func @_mask_reduce_kernel(%arg0: i32, %arg1: i32, %arg2: memref<128x512xf32, #tpu.memory_space<vmem>>, %arg3: memref<128x512xi8, #tpu.memory_space<vmem>>, %arg4: memref<1x128xf32, #tpu.memory_space<vmem>>, %arg5: memref<1x128xi32, #tpu.memory_space<vmem>>, %arg6: memref<128x1xf32, #tpu.memory_space<vmem>>, %arg7: memref<128x1xi32, #tpu.memory_space<vmem>>) attributes {dimension_semantics = [#tpu.dimension_semantics<parallel>, #tpu.dimension_semantics<arbitrary>], iteration_bounds = array<i64: 2, 2>, scalar_prefetch = 0 : i64, scratch_operands = 2 : i64, tpu.core_type = #tpu.core_type<tc>, window_params = [{transform_indices = @transform_0, window_bounds = array<i64: 128, 512>}, {transform_indices = @transform_1, window_bounds = array<i64: 128, 512>}, {transform_indices = @transform_2, window_bounds = array<i64: 1, 128>}, {transform_indices = @transform_3, window_bounds = array<i64: 1, 128>}]} {
    %c0_i32 = arith.constant 0 : i32
    %0 = arith.cmpi eq, %arg1, %c0_i32 : i32
    %1 = arith.extui %0 : i1 to i32
    %c0_i32_0 = arith.constant 0 : i32
    %2 = arith.cmpi ne, %1, %c0_i32_0 : i32
    scf.if %2 {
      %cst_17 = arith.constant 0xFF800000 : f32
      %32 = vector.broadcast %cst_17 : f32 to vector<128x1xf32>
      %c0_18 = arith.constant 0 : index
      %c0_19 = arith.constant 0 : index
      %33 = vector.load %arg6[%c0_18, %c0_19] : memref<128x1xf32, #tpu.memory_space<vmem>>, vector<128x1xf32>
      tpu.vector_store %arg6[%c0_18, %c0_19], %32 {strides = array<i32>} : memref<128x1xf32, #tpu.memory_space<vmem>>, vector<128x1xf32>,
      %c0_i32_20 = arith.constant 0 : i32
      %34 = vector.broadcast %c0_i32_20 : i32 to vector<128x1xi32>
      %c0_21 = arith.constant 0 : index
      %c0_22 = arith.constant 0 : index
      %35 = vector.load %arg7[%c0_21, %c0_22] : memref<128x1xi32, #tpu.memory_space<vmem>>, vector<128x1xi32>
      tpu.vector_store %arg7[%c0_21, %c0_22], %34 {strides = array<i32>} : memref<128x1xi32, #tpu.memory_space<vmem>>, vector<128x1xi32>,
    } else {
    }
    %c0 = arith.constant 0 : index
    %c0_1 = arith.constant 0 : index
    %3 = vector.load %arg2[%c0, %c0_1] : memref<128x512xf32, #tpu.memory_space<vmem>>, vector<128x512xf32>
    %c0_2 = arith.constant 0 : index
    %c0_3 = arith.constant 0 : index
    %4 = vector.load %arg3[%c0_2, %c0_3] : memref<128x512xi8, #tpu.memory_space<vmem>>, vector<128x512xi8>
    %c0_i8 = arith.constant 0 : i8
    %5 = vector.broadcast %c0_i8 : i8 to vector<128x512xi8>
    %6 = arith.cmpi ne, %4, %5 : vector<128x512xi8>
    %cst = arith.constant -9.99999979E+10 : f32
    %7 = vector.broadcast %cst : f32 to vector<128x512xf32>
    %8 = arith.select %6, %3, %7 : vector<128x512xi1>, vector<128x512xf32>
    %9 = tpu.iota {dimensions = array<i32: 1>} : vector<128x512xi32>
    %c512_i32 = arith.constant 512 : i32
    %10 = arith.muli %arg1, %c512_i32 : i32
    %11 = vector.broadcast %10 : i32 to vector<128x512xi32>
    %12 = arith.addi %9, %11 : vector<128x512xi32>
    %cst_4 = arith.constant dense<0xFF800000> : vector<128xf32>
    %13 = vector.multi_reduction <maximumf>, %8, %cst_4 [1] : vector<128x512xf32> to vector<128xf32>
    %14 = vector.shape_cast %13 : vector<128xf32> to vector<128x1xf32>
    %15 = vector.broadcast %14 : vector<128x1xf32> to vector<128x512xf32>
    %16 = arith.cmpf oge, %8, %15 : vector<128x512xf32>
    %c2147483647_i32 = arith.constant 2147483647 : i32
    %17 = vector.broadcast %c2147483647_i32 : i32 to vector<128x512xi32>
    %18 = arith.select %16, %12, %17 : vector<128x512xi1>, vector<128x512xi32>
    %cst_5 = arith.constant dense<2147483647> : vector<128xi32>
    %19 = vector.multi_reduction <minsi>, %18, %cst_5 [1] : vector<128x512xi32> to vector<128xi32>
    %20 = vector.shape_cast %19 : vector<128xi32> to vector<128x1xi32>
    %c0_6 = arith.constant 0 : index
    %c0_7 = arith.constant 0 : index
    %21 = vector.load %arg6[%c0_6, %c0_7] : memref<128x1xf32, #tpu.memory_space<vmem>>, vector<128x1xf32>
    %22 = arith.cmpf ogt, %14, %21 : vector<128x1xf32>
    %c0_8 = arith.constant 0 : index
    %c0_9 = arith.constant 0 : index
    %23 = vector.load %arg7[%c0_8, %c0_9] : memref<128x1xi32, #tpu.memory_space<vmem>>, vector<128x1xi32>
    %24 = arith.select %22, %20, %23 : vector<128x1xi1>, vector<128x1xi32>
    %c0_10 = arith.constant 0 : index
    %c0_11 = arith.constant 0 : index
    %25 = vector.load %arg7[%c0_10, %c0_11] : memref<128x1xi32, #tpu.memory_space<vmem>>, vector<128x1xi32>
    tpu.vector_store %arg7[%c0_10, %c0_11], %24 {strides = array<i32>} : memref<128x1xi32, #tpu.memory_space<vmem>>, vector<128x1xi32>,
    %c0_12 = arith.constant 0 : index
    %c0_13 = arith.constant 0 : index
    %26 = vector.load %arg6[%c0_12, %c0_13] : memref<128x1xf32, #tpu.memory_space<vmem>>, vector<128x1xf32>
    %27 = arith.select %22, %14, %26 : vector<128x1xi1>, vector<128x1xf32>
    %c0_14 = arith.constant 0 : index
    %c0_15 = arith.constant 0 : index
    %28 = vector.load %arg6[%c0_14, %c0_15] : memref<128x1xf32, #tpu.memory_space<vmem>>, vector<128x1xf32>
    tpu.vector_store %arg6[%c0_14, %c0_15], %27 {strides = array<i32>} : memref<128x1xf32, #tpu.memory_space<vmem>>, vector<128x1xf32>,
    %c1_i32 = arith.constant 1 : i32
    %29 = arith.cmpi eq, %arg1, %c1_i32 : i32
    %30 = arith.extui %29 : i1 to i32
    %c0_i32_16 = arith.constant 0 : i32
    %31 = arith.cmpi ne, %30, %c0_i32_16 : i32
    scf.if %31 {
      %c0_17 = arith.constant 0 : index
      %c0_18 = arith.constant 0 : index
      %32 = vector.load %arg6[%c0_17, %c0_18] : memref<128x1xf32, #tpu.memory_space<vmem>>, vector<128x1xf32>
      %33 = tpu.iota {dimensions = array<i32: 0>} : vector<128x128xi32>
      %34 = tpu.iota {dimensions = array<i32: 1>} : vector<128x128xi32>
      %35 = arith.cmpi eq, %33, %34 : vector<128x128xi32>
      %cst_19 = arith.constant 0.000000e+00 : f32
      %36 = vector.broadcast %cst_19 : f32 to vector<128x1xf32>
      %37 = vector.shape_cast %32 : vector<128x1xf32> to vector<128x1xf32>
      %38 = vector.broadcast %37 : vector<128x1xf32> to vector<128x128xf32>
      %39 = vector.shape_cast %36 : vector<128x1xf32> to vector<128x1xf32>
      %40 = vector.broadcast %39 : vector<128x1xf32> to vector<128x128xf32>
      %41 = arith.select %35, %38, %40 : vector<128x128xi1>, vector<128x128xf32>
      %cst_20 = arith.constant dense<0.000000e+00> : vector<128xf32>
      %42 = vector.multi_reduction <add>, %41, %cst_20 [0] : vector<128x128xf32> to vector<128xf32>
      %43 = vector.shape_cast %42 : vector<128xf32> to vector<1x128xf32>
      %c0_21 = arith.constant 0 : index
      %c0_22 = arith.constant 0 : index
      %44 = vector.load %arg4[%c0_21, %c0_22] : memref<1x128xf32, #tpu.memory_space<vmem>>, vector<1x128xf32>
      tpu.vector_store %arg4[%c0_21, %c0_22], %43 {strides = array<i32>} : memref<1x128xf32, #tpu.memory_space<vmem>>, vector<1x128xf32>,
      %c0_23 = arith.constant 0 : index
      %c0_24 = arith.constant 0 : index
      %45 = vector.load %arg7[%c0_23, %c0_24] : memref<128x1xi32, #tpu.memory_space<vmem>>, vector<128x1xi32>
      %46 = tpu.iota {dimensions = array<i32: 0>} : vector<128x128xi32>
      %47 = tpu.iota {dimensions = array<i32: 1>} : vector<128x128xi32>
      %48 = arith.cmpi eq, %46, %47 : vector<128x128xi32>
      %c0_i32_25 = arith.constant 0 : i32
      %49 = vector.broadcast %c0_i32_25 : i32 to vector<128x1xi32>
      %50 = vector.shape_cast %45 : vector<128x1xi32> to vector<128x1xi32>
      %51 = vector.broadcast %50 : vector<128x1xi32> to vector<128x128xi32>
      %52 = vector.shape_cast %49 : vector<128x1xi32> to vector<128x1xi32>
      %53 = vector.broadcast %52 : vector<128x1xi32> to vector<128x128xi32>
      %54 = arith.select %48, %51, %53 : vector<128x128xi1>, vector<128x128xi32>
      %cst_26 = arith.constant dense<0> : vector<128xi32>
      %55 = vector.multi_reduction <add>, %54, %cst_26 [0] : vector<128x128xi32> to vector<128xi32>
      %56 = vector.shape_cast %55 : vector<128xi32> to vector<1x128xi32>
      %c0_27 = arith.constant 0 : index
      %c0_28 = arith.constant 0 : index
      %57 = vector.load %arg5[%c0_27, %c0_28] : memref<1x128xi32, #tpu.memory_space<vmem>>, vector<1x128xi32>
      tpu.vector_store %arg5[%c0_27, %c0_28], %56 {strides = array<i32>} : memref<1x128xi32, #tpu.memory_space<vmem>>, vector<1x128xi32>,
    } else {
    }
    return
  }
  func.func @transform_0(%arg0: i32, %arg1: i32) -> (i32, i32) {
    %c0_i32 = arith.constant 0 : i32
    return %arg0, %arg1 : i32, i32
  }
  func.func @transform_1(%arg0: i32, %arg1: i32) -> (i32, i32) {
    %c0_i32 = arith.constant 0 : i32
    return %arg0, %arg1 : i32, i32
  }
  func.func @transform_2(%arg0: i32, %arg1: i32) -> (i32, i32) {
    %c0_i32 = arith.constant 0 : i32
    %c0_i32_0 = arith.constant 0 : i32
    return %c0_i32, %arg0 : i32, i32
  }
  func.func @transform_3(%arg0: i32, %arg1: i32) -> (i32, i32) {
    %c0_i32 = arith.constant 0 : i32
    %c0_i32_0 = arith.constant 0 : i32
    return %c0_i32, %arg0 : i32, i32
  }
}

</mosaic_0001>

<llo_original>
// kernel: tpu_custom_call.1
$region0: #{tpu_custom_call.1}
  #allocation0 [shape = 'u32[]', space=smem, size = 0x4, offset = 0x4, fixed_abs, tag = 'smem constant byte address 0x4 - core index']
  #allocation1 [shape = 'u32[72,128]{1,0:T(1,128)}', space=vmem, size = 0x9000, scoped, tag = 'internal scratch']
  #allocation2 [shape = 'f32[128,1]{1,0:T(8,128)}', space=vmem, size = 0x10000, scoped, tag = 'scratch operand']
  #allocation3 [shape = 's32[128,1]{1,0:T(8,128)}', space=vmem, size = 0x10000, scoped, tag = 'scratch operand']
  %s0 = inlined_call_operand.hbm [shape: f32[256,1024], index: 0, kind: input, shape index: {}]
  %s1 = inlined_call_operand.hbm [shape: s8[256,1024], index: 1, kind: input, shape index: {}]
  %s2 = inlined_call_operand.hbm [shape: f32[1,256], index: 2, kind: output, shape index: {0}]
  %s3 = inlined_call_operand.hbm [shape: s32[1,256], index: 3, kind: output, shape index: {1}]
  %4 = xla_tuple %s2, %s3
  %s5 = sld [smem:[#allocation0]]
  $region65: #{tpu_custom_call.1} parent=0
    _
  %s7 = ssub.s32 1, %s5
  %s8 = scalar_select 0, %s7, %s5
  $region1: #{tpu_custom_call.1} parent=0
    #allocation4 [shape = 'u8[524288]{0}', space=vmem, size = 0x80000, scoped, tag = 'input window, operand 0']
    #allocation5 [shape = 's32[2]{0}', space=sflag, size = 0x8, scoped, tag = 'scoped memory for tpu_custom_call.1']
    #allocation6 [shape = 's32[2]{0}', space=sflag, size = 0x8, scoped, tag = 'scoped memory for tpu_custom_call.1']
    #allocation7 [shape = 'u8[131072]{0}', space=vmem, size = 0x20000, scoped, tag = 'input window, operand 1']
    #allocation8 [shape = 's32[2]{0}', space=sflag, size = 0x8, scoped, tag = 'scoped memory for tpu_custom_call.1']
    #allocation9 [shape = 'u8[1024]{0}', space=vmem, size = 0x400, scoped, tag = 'output window, operand 0']
    #allocation10 [shape = 'u8[1024]{0}', space=vmem, size = 0x400, scoped, tag = 'output window, operand 1']
    #allocation11 [shape = 's32[2]{0}', space=sflag, size = 0x8, scoped, tag = 'scoped memory for tpu_custom_call.1']
    %9 = vsyncpa [#allocation5], 0
    %s10 = scalar_lea.sflag [#allocation5], 1
    %11 = vsyncpa %s10, 0
    %12 = vsyncpa [#allocation8], 0
    %s13 = scalar_lea.sflag [#allocation8], 1
    %14 = vsyncpa %s13, 0
    %15 = vsyncpa [#allocation6], 0
    %s16 = scalar_lea.sflag [#allocation6], 1
    %17 = vsyncpa %s16, 0
    %18 = vsyncpa [#allocation11], 0
    %s19 = scalar_lea.sflag [#allocation11], 1
    %20 = vsyncpa %s19, 0
    loop: start=0, step=1, limit=6
    $region2: #{tpu_custom_call.1} parent=1 // loop_pre_header
      _
    $region3: #{tpu_custom_call.1} parent=1 // loop_header
      %s22 = sphi 0, %s26
      %p23 = scmp.ge.s32.totalorder %s22, 6
      %s29 = sphi 0, %s41
      %s30 = sphi 0, %s37
      %s31 = sphi 0, %s29
      %s32 = sphi 0, %s30
      %s33 = sphi 0, %s31
      %s34 = sphi 0, %s32
      %s46 = sphi 0, %s48
      %s49 = sphi 0, %s46
      %s50 = sphi 0, %s49
      %s66 = sphi 0, %s50
      %s74 = sphi 0, %s76
      %s77 = sphi 0, %s74
      %s78 = sphi 0, %s77
      %s94 = sphi 0, %s78
      %s100 = sphi 0, %s102
      %s103 = sphi 0, %s100
      %s104 = sphi 0, %s103
      %s120 = sphi 0, %s104
      %s126 = sphi 0, %s128
      %s129 = sphi 0, %s126
      %s130 = sphi 0, %s129
      %s146 = sphi 0, %s130
    $region4: #{tpu_custom_call.1} parent=1 // loop_header_branch
      %25 = sbr.rel (%p23) target = $region8
    $region5: #{tpu_custom_call.1} parent=1 // loop_body
      %s27 = ssub.s32 %s22, 1
      %s28 = ssub.s32 %s22, 2
      %s35 = sadd.s32 1, %s30
      %p36 = scmp.ge.s32.totalorder %s35, 2
      %s37 = scalar_select %p36, 0, %s35
      %s38 = sadd.s32 1, %s29
      %s39 = scalar_select %p36, %s38, %s29
      %p40 = scmp.ge.s32.totalorder %s39, 2
      %s41 = scalar_select %p40, 0, %s39
      %s42 = ssub.s32 %s29, %s41
      %s43 = ssub.s32 %s30, %s37
      %s44 = sor.u32 %s42, %s43
      %p45 = scmp.eq.s32.totalorder %s44, 0
      %s47 = sadd.s32 %s46, 1
      %s48 = scalar_select %p45, %s46, %s47
      %p51 = pneg %p45
      %p52 = scmp.eq.s32.totalorder %s22, 3
      %p53 = por %p51, %p52
      %p54 = scmp.ne.s32.totalorder %s46, %s49
      %p55 = scmp.eq.s32.totalorder %s22, 0
      %p56 = por %p54, %p55
      %p57 = scmp.ne.s32.totalorder %s46, %s49
      %p58 = scmp.eq.s32.totalorder %s27, 3
      %p59 = por %p57, %p58
      %p60 = scmp.ne.s32.totalorder %s49, %s50
      %p61 = scmp.eq.s32.totalorder %s27, 0
      %p62 = por %p60, %p61
      %p63 = scmp.ne.s32.totalorder %s49, %s50
      %p64 = scmp.eq.s32.totalorder %s28, 3
      %p65 = por %p63, %p64
      %p67 = scmp.ne.s32.totalorder %s50, %s66
      %p68 = scmp.eq.s32.totalorder %s28, 0
      %p69 = por %p67, %p68
      %s70 = ssub.s32 %s29, %s41
      %s71 = ssub.s32 %s30, %s37
      %s72 = sor.u32 %s70, %s71
      %p73 = scmp.eq.s32.totalorder %s72, 0
      %s75 = sadd.s32 %s74, 1
      %s76 = scalar_select %p73, %s74, %s75
      %p79 = pneg %p73
      %p80 = scmp.eq.s32.totalorder %s22, 3
      %p81 = por %p79, %p80
      %p82 = scmp.ne.s32.totalorder %s74, %s77
      %p83 = scmp.eq.s32.totalorder %s22, 0
      %p84 = por %p82, %p83
      %p85 = scmp.ne.s32.totalorder %s74, %s77
      %p86 = scmp.eq.s32.totalorder %s27, 3
      %p87 = por %p85, %p86
      %p88 = scmp.ne.s32.totalorder %s77, %s78
      %p89 = scmp.eq.s32.totalorder %s27, 0
      %p90 = por %p88, %p89
      %p91 = scmp.ne.s32.totalorder %s77, %s78
      %p92 = scmp.eq.s32.totalorder %s28, 3
      %p93 = por %p91, %p92
      %p95 = scmp.ne.s32.totalorder %s78, %s94
      %p96 = scmp.eq.s32.totalorder %s28, 0
      %p97 = por %p95, %p96
      %s98 = ssub.s32 %s29, %s41
      %p99 = scmp.eq.s32.totalorder %s98, 0
      %s101 = sadd.s32 %s100, 1
      %s102 = scalar_select %p99, %s100, %s101
      %p105 = pneg %p99
      %p106 = scmp.eq.s32.totalorder %s22, 3
      %p107 = por %p105, %p106
      %p108 = scmp.ne.s32.totalorder %s100, %s103
      %p109 = scmp.eq.s32.totalorder %s22, 0
      %p110 = por %p108, %p109
      %p111 = scmp.ne.s32.totalorder %s100, %s103
      %p112 = scmp.eq.s32.totalorder %s27, 3
      %p113 = por %p111, %p112
      %p114 = scmp.ne.s32.totalorder %s103, %s104
      %p115 = scmp.eq.s32.totalorder %s27, 0
      %p116 = por %p114, %p115
      %p117 = scmp.ne.s32.totalorder %s103, %s104
      %p118 = scmp.eq.s32.totalorder %s28, 3
      %p119 = por %p117, %p118
      %p121 = scmp.ne.s32.totalorder %s104, %s120
      %p122 = scmp.eq.s32.totalorder %s28, 0
      %p123 = por %p121, %p122
      %s124 = ssub.s32 %s29, %s41
      %p125 = scmp.eq.s32.totalorder %s124, 0
      %s127 = sadd.s32 %s126, 1
      %s128 = scalar_select %p125, %s126, %s127
      %p131 = pneg %p125
      %p132 = scmp.eq.s32.totalorder %s22, 3
      %p133 = por %p131, %p132
      %p134 = scmp.ne.s32.totalorder %s126, %s129
      %p135 = scmp.eq.s32.totalorder %s22, 0
      %p136 = por %p134, %p135
      %p137 = scmp.ne.s32.totalorder %s126, %s129
      %p138 = scmp.eq.s32.totalorder %s27, 3
      %p139 = por %p137, %p138
      %p140 = scmp.ne.s32.totalorder %s129, %s130
      %p141 = scmp.eq.s32.totalorder %s27, 0
      %p142 = por %p140, %p141
      %p143 = scmp.ne.s32.totalorder %s129, %s130
      %p144 = scmp.eq.s32.totalorder %s28, 3
      %p145 = por %p143, %p144
      %p147 = scmp.ne.s32.totalorder %s130, %s146
      %p148 = scmp.eq.s32.totalorder %s28, 0
      %p149 = por %p147, %p148
      %p150 = scmp.le.s32.totalorder 1, %s22
      %p151 = scmp.lt.s32.totalorder %s22, 5
      %p152 = pnand %p150, %p151
      %p153 = pneg %p152
      // Predicated region
      $region9: #{tpu_custom_call.1} parent=5 // pred_check
        _
      $region10: #{tpu_custom_call.1} parent=5 // pred_check_branch
        %155 = sbr.rel (%p152) target = $region12
      $region11: #{tpu_custom_call.1} parent=5 // pred_region
        %s156 = ssub.s32 %s22, 1
      $region12: #{tpu_custom_call.1} parent=5 // pred_fallthru
        _
      %p157 = scmp.lt.s32.totalorder %s22, 4
      // Predicated region
      $region13: #{tpu_custom_call.1} parent=5 // pred_check
        %p158 = pneg %p157
      $region14: #{tpu_custom_call.1} parent=5 // pred_check_branch
        %160 = sbr.rel (%p158) target = $region16
      $region15: #{tpu_custom_call.1} parent=5 // pred_region
        // Predicated region
        $region17: #{tpu_custom_call.1} parent=15 // pred_check
          %p161 = pneg %p56
        $region18: #{tpu_custom_call.1} parent=15 // pred_check_branch
          %163 = sbr.rel (%p161) target = $region20
        $region19: #{tpu_custom_call.1} parent=15 // pred_region
          %s164 = sand.u32 %s46, 1
          %s165 = scalar_lea.sflag [#allocation5], %s164
          %s166 = sand.u32 %s46, 1
          %s167 = smul.addr %s166, 512
          %s168 = scalar_lea.vmem [#allocation4], %s167
          %s169 = smul.u32 16, %s29
          %s170 = smul.u32 4, %s30
          %172 = vsyncadd %s165, 0
          %s173 = smul.addr %s169, 8
          %s174 = sadd.s32 %s170, %s173
          %s175 = smul.addr %s174, 8
          %s176 = scalar_lea.hbm %s0, %s175
          %s177 = sshll.u32 %s176, 4
          %s178 = int_to_ptr.hbm [resolvable:$true] %s177
          %s179 = sshll.u32 %s168, 4
          %s180 = int_to_ptr.vmem [resolvable:$true] %s179
          %185 = dma.hbm_to_vmem [thread:$0]  %s178, 8192, %s180, %s165, 1024, 512, 32
        $region20: #{tpu_custom_call.1} parent=15 // pred_fallthru
          _
        // Predicated region
        $region21: #{tpu_custom_call.1} parent=15 // pred_check
          %p186 = pneg %p84
        $region22: #{tpu_custom_call.1} parent=15 // pred_check_branch
          %188 = sbr.rel (%p186) target = $region24
        $region23: #{tpu_custom_call.1} parent=15 // pred_region
          %s189 = sand.u32 %s74, 1
          %s190 = scalar_lea.sflag [#allocation8], %s189
          %s191 = sand.u32 %s74, 1
          %s192 = smul.addr %s191, 128
          %s193 = scalar_lea.vmem [#allocation7], %s192
          %s194 = smul.u32 4, %s29
          %s195 = smul.u32 4, %s30
          %197 = vsyncadd %s190, 0
          %s198 = smul.addr %s194, 8
          %s199 = sadd.s32 %s195, %s198
          %s200 = smul.addr %s199, 8
          %s201 = scalar_lea.hbm %s1, %s200
          %s202 = sshll.u32 %s201, 4
          %s203 = int_to_ptr.hbm [resolvable:$true] %s202
          %s204 = sshll.u32 %s193, 4
          %s205 = int_to_ptr.vmem [resolvable:$true] %s204
          %210 = dma.hbm_to_vmem [thread:$0]  %s203, 2048, %s205, %s190, 1024, 512, 32
        $region24: #{tpu_custom_call.1} parent=15 // pred_fallthru
          _
      $region16: #{tpu_custom_call.1} parent=5 // pred_fallthru
        _
      %p211 = scmp.le.s32.totalorder 1, %s22
      %p212 = scmp.lt.s32.totalorder %s22, 5
      %p213 = pnand %p211, %p212
      %p214 = pneg %p213
      // Predicated region
      $region25: #{tpu_custom_call.1} parent=5 // pred_check
        _
      $region26: #{tpu_custom_call.1} parent=5 // pred_check_branch
        %216 = sbr.rel (%p213) target = $region28
      $region27: #{tpu_custom_call.1} parent=5 // pred_region
        %s217 = ssub.s32 %s22, 1
        %s218 = sand.u32 %s49, 1
        %s219 = scalar_lea.sflag [#allocation5], %s218
        %s220 = sand.u32 %s49, 1
        %s221 = smul.addr %s220, 512
        %s222 = scalar_lea.vmem [#allocation4], %s221
        // Predicated region
        $region29: #{tpu_custom_call.1} parent=27 // pred_check
          %p223 = pneg %p62
        $region30: #{tpu_custom_call.1} parent=27 // pred_check_branch
          %225 = sbr.rel (%p223) target = $region32
        $region31: #{tpu_custom_call.1} parent=27 // pred_region
          %227 = dma.done %s219, 8192
        $region32: #{tpu_custom_call.1} parent=27 // pred_fallthru
          _
        %s228 = sand.u32 %s77, 1
        %s229 = scalar_lea.sflag [#allocation8], %s228
        %s230 = sand.u32 %s77, 1
        %s231 = smul.addr %s230, 128
        %s232 = scalar_lea.vmem [#allocation7], %s231
        // Predicated region
        $region33: #{tpu_custom_call.1} parent=27 // pred_check
          %p233 = pneg %p90
        $region34: #{tpu_custom_call.1} parent=27 // pred_check_branch
          %235 = sbr.rel (%p233) target = $region36
        $region35: #{tpu_custom_call.1} parent=27 // pred_region
          %237 = dma.done %s229, 2048
        $region36: #{tpu_custom_call.1} parent=27 // pred_fallthru
          _
        %s238 = sand.u32 %s49, 1
        %s239 = scalar_lea.sflag [#allocation5], %s238
        %s240 = sand.u32 %s49, 1
        %s241 = smul.addr %s240, 512
        %s242 = scalar_lea.vmem [#allocation4], %s241
        %p243 = pneg %p62
        %p244 = pneg %p59
        %s245 = sand.u32 %s77, 1
        %s246 = scalar_lea.sflag [#allocation8], %s245
        %s247 = sand.u32 %s77, 1
        %s248 = smul.addr %s247, 128
        %s249 = scalar_lea.vmem [#allocation7], %s248
        %p250 = pneg %p90
        %p251 = pneg %p87
        %p252 = pneg %p116
        %p253 = pneg %p113
        %s254 = sand.u32 %s103, 1
        %s255 = scalar_lea.sflag [#allocation6], %s254
        %s256 = sand.u32 %s103, 1
        %s257 = scalar_lea.vmem [#allocation9], %s256
        %p258 = pneg %p142
        %p259 = pneg %p139
        %s260 = sand.u32 %s129, 1
        %s261 = scalar_lea.sflag [#allocation11], %s260
        %s262 = sand.u32 %s129, 1
        %s263 = scalar_lea.vmem [#allocation10], %s262
        %s264 = smul.u32 16, %s31
        %s265 = smul.u32 4, %s32
        %s266 = smul.u32 4, %s31
        %s267 = smul.u32 4, %s32
        %p270 = scmp.eq.s32.totalorder %s32, 0
        // Predicated region
        $region37: #{tpu_custom_call.1} parent=27 // pred_check
          %p271 = pneg %p270
        $region38: #{tpu_custom_call.1} parent=27 // pred_check_branch
          %273 = sbr.rel (%p271) target = $region40
        $region39: #{tpu_custom_call.1} parent=27 // pred_region
          %vm274 = vcmask 7168
          %275 = vst.msk [vmem:[#allocation2] sm:$0xff] %vm274, -inf
          %276 = vst.msk [vmem:[#allocation2 + $0x8] sm:$0xff] %vm274, -inf
          %277 = vst.msk [vmem:[#allocation2 + $0x10] sm:$0xff] %vm274, -inf
          %278 = vst.msk [vmem:[#allocation2 + $0x18] sm:$0xff] %vm274, -inf
          %279 = vst.msk [vmem:[#allocation2 + $0x20] sm:$0xff] %vm274, -inf
          %280 = vst.msk [vmem:[#allocation2 + $0x28] sm:$0xff] %vm274, -inf
          %281 = vst.msk [vmem:[#allocation2 + $0x30] sm:$0xff] %vm274, -inf
          %282 = vst.msk [vmem:[#allocation2 + $0x38] sm:$0xff] %vm274, -inf
          %283 = vst.msk [vmem:[#allocation2 + $0x40] sm:$0xff] %vm274, -inf
          %284 = vst.msk [vmem:[#allocation2 + $0x48] sm:$0xff] %vm274, -inf
          %285 = vst.msk [vmem:[#allocation2 + $0x50] sm:$0xff] %vm274, -inf
          %286 = vst.msk [vmem:[#allocation2 + $0x58] sm:$0xff] %vm274, -inf
          %287 = vst.msk [vmem:[#allocation2 + $0x60] sm:$0xff] %vm274, -inf
          %288 = vst.msk [vmem:[#allocation2 + $0x68] sm:$0xff] %vm274, -inf
          %289 = vst.msk [vmem:[#allocation2 + $0x70] sm:$0xff] %vm274, -inf
          %290 = vst.msk [vmem:[#allocation2 + $0x78] sm:$0xff] %vm274, -inf
          %291 = vst.msk [vmem:[#allocation3] sm:$0xff] %vm274, 0
          %292 = vst.msk [vmem:[#allocation3 + $0x8] sm:$0xff] %vm274, 0
          %293 = vst.msk [vmem:[#allocation3 + $0x10] sm:$0xff] %vm274, 0
          %294 = vst.msk [vmem:[#allocation3 + $0x18] sm:$0xff] %vm274, 0
          %295 = vst.msk [vmem:[#allocation3 + $0x20] sm:$0xff] %vm274, 0
          %296 = vst.msk [vmem:[#allocation3 + $0x28] sm:$0xff] %vm274, 0
          %297 = vst.msk [vmem:[#allocation3 + $0x30] sm:$0xff] %vm274, 0
          %298 = vst.msk [vmem:[#allocation3 + $0x38] sm:$0xff] %vm274, 0
          %299 = vst.msk [vmem:[#allocation3 + $0x40] sm:$0xff] %vm274, 0
          %300 = vst.msk [vmem:[#allocation3 + $0x48] sm:$0xff] %vm274, 0
          %301 = vst.msk [vmem:[#allocation3 + $0x50] sm:$0xff] %vm274, 0
          %302 = vst.msk [vmem:[#allocation3 + $0x58] sm:$0xff] %vm274, 0
          %303 = vst.msk [vmem:[#allocation3 + $0x60] sm:$0xff] %vm274, 0
          %304 = vst.msk [vmem:[#allocation3 + $0x68] sm:$0xff] %vm274, 0
          %305 = vst.msk [vmem:[#allocation3 + $0x70] sm:$0xff] %vm274, 0
          %306 = vst.msk [vmem:[#allocation3 + $0x78] sm:$0xff] %vm274, 0
        $region40: #{tpu_custom_call.1} parent=27 // pred_fallthru
          _
        %v307 = vld [vmem:[%s222] sm:$0xff]
        %v308 = vld [vmem:[%s222 + $0x8] sm:$0xff]
        %v309 = vld [vmem:[%s222 + $0x10] sm:$0xff]
        %v310 = vld [vmem:[%s222 + $0x18] sm:$0xff]
        %v311 = vld [vmem:[%s222 + $0x20] sm:$0xff]
        %v312 = vld [vmem:[%s222 + $0x28] sm:$0xff]
        %v313 = vld [vmem:[%s222 + $0x30] sm:$0xff]
        %v314 = vld [vmem:[%s222 + $0x38] sm:$0xff]
        %v315 = vld [vmem:[%s222 + $0x40] sm:$0xff]
        %v316 = vld [vmem:[%s222 + $0x48] sm:$0xff]
        %v317 = vld [vmem:[%s222 + $0x50] sm:$0xff]
        %v318 = vld [vmem:[%s222 + $0x58] sm:$0xff]
        %v319 = vld [vmem:[%s222 + $0x60] sm:$0xff]
        %v320 = vld [vmem:[%s222 + $0x68] sm:$0xff]
        %v321 = vld [vmem:[%s222 + $0x70] sm:$0xff]
        %v322 = vld [vmem:[%s222 + $0x78] sm:$0xff]
        %v323 = vld [vmem:[%s222 + $0x80] sm:$0xff]
        %v324 = vld [vmem:[%s222 + $0x88] sm:$0xff]
        %v325 = vld [vmem:[%s222 + $0x90] sm:$0xff]
        %v326 = vld [vmem:[%s222 + $0x98] sm:$0xff]
        %v327 = vld [vmem:[%s222 + $0xa0] sm:$0xff]
        %v328 = vld [vmem:[%s222 + $0xa8] sm:$0xff]
        %v329 = vld [vmem:[%s222 + $0xb0] sm:$0xff]
        %v330 = vld [vmem:[%s222 + $0xb8] sm:$0xff]
        %v331 = vld [vmem:[%s222 + $0xc0] sm:$0xff]
        %v332 = vld [vmem:[%s222 + $0xc8] sm:$0xff]
        %v333 = vld [vmem:[%s222 + $0xd0] sm:$0xff]
        %v334 = vld [vmem:[%s222 + $0xd8] sm:$0xff]
        %v335 = vld [vmem:[%s222 + $0xe0] sm:$0xff]
        %v336 = vld [vmem:[%s222 + $0xe8] sm:$0xff]
        %v337 = vld [vmem:[%s222 + $0xf0] sm:$0xff]
        %v338 = vld [vmem:[%s222 + $0xf8] sm:$0xff]
        %v339 = vld [vmem:[%s222 + $0x100] sm:$0xff]
        %v340 = vld [vmem:[%s222 + $0x108] sm:$0xff]
        %v341 = vld [vmem:[%s222 + $0x110] sm:$0xff]
        %v342 = vld [vmem:[%s222 + $0x118] sm:$0xff]
        %v343 = vld [vmem:[%s222 + $0x120] sm:$0xff]
        %v344 = vld [vmem:[%s222 + $0x128] sm:$0xff]
        %v345 = vld [vmem:[%s222 + $0x130] sm:$0xff]
        %v346 = vld [vmem:[%s222 + $0x138] sm:$0xff]
        %v347 = vld [vmem:[%s222 + $0x140] sm:$0xff]
        %v348 = vld [vmem:[%s222 + $0x148] sm:$0xff]
        %v349 = vld [vmem:[%s222 + $0x150] sm:$0xff]
        %v350 = vld [vmem:[%s222 + $0x158] sm:$0xff]
        %v351 = vld [vmem:[%s222 + $0x160] sm:$0xff]
        %v352 = vld [vmem:[%s222 + $0x168] sm:$0xff]
        %v353 = vld [vmem:[%s222 + $0x170] sm:$0xff]
        %v354 = vld [vmem:[%s222 + $0x178] sm:$0xff]
        %v355 = vld [vmem:[%s222 + $0x180] sm:$0xff]
        %v356 = vld [vmem:[%s222 + $0x188] sm:$0xff]
        %v357 = vld [vmem:[%s222 + $0x190] sm:$0xff]
        %v358 = vld [vmem:[%s222 + $0x198] sm:$0xff]
        %v359 = vld [vmem:[%s222 + $0x1a0] sm:$0xff]
        %v360 = vld [vmem:[%s222 + $0x1a8] sm:$0xff]
        %v361 = vld [vmem:[%s222 + $0x1b0] sm:$0xff]
        %v362 = vld [vmem:[%s222 + $0x1b8] sm:$0xff]
        %v363 = vld [vmem:[%s222 + $0x1c0] sm:$0xff]
        %v364 = vld [vmem:[%s222 + $0x1c8] sm:$0xff]
        %v365 = vld [vmem:[%s222 + $0x1d0] sm:$0xff]
        %v366 = vld [vmem:[%s222 + $0x1d8] sm:$0xff]
        %v367 = vld [vmem:[%s222 + $0x1e0] sm:$0xff]
        %v368 = vld [vmem:[%s222 + $0x1e8] sm:$0xff]
        %v369 = vld [vmem:[%s222 + $0x1f0] sm:$0xff]
        %v370 = vld [vmem:[%s222 + $0x1f8] sm:$0xff]
        %v371 = vld [vmem:[%s232] sm:$0xff]
        %v372 = vld [vmem:[%s232 + $0x8] sm:$0xff]
        %v373 = vld [vmem:[%s232 + $0x10] sm:$0xff]
        %v374 = vld [vmem:[%s232 + $0x18] sm:$0xff]
        %v375 = vld [vmem:[%s232 + $0x20] sm:$0xff]
        %v376 = vld [vmem:[%s232 + $0x28] sm:$0xff]
        %v377 = vld [vmem:[%s232 + $0x30] sm:$0xff]
        %v378 = vld [vmem:[%s232 + $0x38] sm:$0xff]
        %v379 = vld [vmem:[%s232 + $0x40] sm:$0xff]
        %v380 = vld [vmem:[%s232 + $0x48] sm:$0xff]
        %v381 = vld [vmem:[%s232 + $0x50] sm:$0xff]
        %v382 = vld [vmem:[%s232 + $0x58] sm:$0xff]
        %v383 = vld [vmem:[%s232 + $0x60] sm:$0xff]
        %v384 = vld [vmem:[%s232 + $0x68] sm:$0xff]
        %v385 = vld [vmem:[%s232 + $0x70] sm:$0xff]
        %v386 = vld [vmem:[%s232 + $0x78] sm:$0xff]
        %vm387 = vnez %v371
        %vm388 = vnez %v372
        %vm389 = vnez %v373
        %vm390 = vnez %v374
        %vm391 = vnez %v375
        %vm392 = vnez %v376
        %vm393 = vnez %v377
        %vm394 = vnez %v378
        %vm395 = vnez %v379
        %vm396 = vnez %v380
        %vm397 = vnez %v381
        %vm398 = vnez %v382
        %vm399 = vnez %v383
        %vm400 = vnez %v384
        %vm401 = vnez %v385
        %vm402 = vnez %v386
        %v403 = vsel %vm387, 16843009, 0
        %v404 = vsel %vm388, 16843009, 0
        %v405 = vsel %vm389, 16843009, 0
        %v406 = vsel %vm390, 16843009, 0
        %v407 = vsel %vm391, 16843009, 0
        %v408 = vsel %vm392, 16843009, 0
        %v409 = vsel %vm393, 16843009, 0
        %v410 = vsel %vm394, 16843009, 0
        %v411 = vsel %vm395, 16843009, 0
        %v412 = vsel %vm396, 16843009, 0
        %v413 = vsel %vm397, 16843009, 0
        %v414 = vsel %vm398, 16843009, 0
        %v415 = vsel %vm399, 16843009, 0
        %v416 = vsel %vm400, 16843009, 0
        %v417 = vsel %vm401, 16843009, 0
        %v418 = vsel %vm402, 16843009, 0
        %v419 = vunpack.c.0.s8 %v403
        %v420 = vunpack.c.0.s8 %v404
        %v421 = vunpack.c.0.s8 %v405
        %v422 = vunpack.c.0.s8 %v406
        %v423 = vunpack.c.1.s8 %v403
        %v424 = vunpack.c.1.s8 %v404
        %v425 = vunpack.c.1.s8 %v405
        %v426 = vunpack.c.1.s8 %v406
        %v427 = vunpack.c.2.s8 %v403
        %v428 = vunpack.c.2.s8 %v404
        %v429 = vunpack.c.2.s8 %v405
        %v430 = vunpack.c.2.s8 %v406
        %v431 = vunpack.c.3.s8 %v403
        %v432 = vunpack.c.3.s8 %v404
        %v433 = vunpack.c.3.s8 %v405
        %v434 = vunpack.c.3.s8 %v406
        %v435 = vunpack.c.0.s8 %v407
        %v436 = vunpack.c.0.s8 %v408
        %v437 = vunpack.c.0.s8 %v409
        %v438 = vunpack.c.0.s8 %v410
        %v439 = vunpack.c.1.s8 %v407
        %v440 = vunpack.c.1.s8 %v408
        %v441 = vunpack.c.1.s8 %v409
        %v442 = vunpack.c.1.s8 %v410
        %v443 = vunpack.c.2.s8 %v407
        %v444 = vunpack.c.2.s8 %v408
        %v445 = vunpack.c.2.s8 %v409
        %v446 = vunpack.c.2.s8 %v410
        %v447 = vunpack.c.3.s8 %v407
        %v448 = vunpack.c.3.s8 %v408
        %v449 = vunpack.c.3.s8 %v409
        %v450 = vunpack.c.3.s8 %v410
        %v451 = vunpack.c.0.s8 %v411
        %v452 = vunpack.c.0.s8 %v412
        %v453 = vunpack.c.0.s8 %v413
        %v454 = vunpack.c.0.s8 %v414
        %v455 = vunpack.c.1.s8 %v411
        %v456 = vunpack.c.1.s8 %v412
        %v457 = vunpack.c.1.s8 %v413
        %v458 = vunpack.c.1.s8 %v414
        %v459 = vunpack.c.2.s8 %v411
        %v460 = vunpack.c.2.s8 %v412
        %v461 = vunpack.c.2.s8 %v413
        %v462 = vunpack.c.2.s8 %v414
        %v463 = vunpack.c.3.s8 %v411
        %v464 = vunpack.c.3.s8 %v412
        %v465 = vunpack.c.3.s8 %v413
        %v466 = vunpack.c.3.s8 %v414
        %v467 = vunpack.c.0.s8 %v415
        %v468 = vunpack.c.0.s8 %v416
        %v469 = vunpack.c.0.s8 %v417
        %v470 = vunpack.c.0.s8 %v418
        %v471 = vunpack.c.1.s8 %v415
        %v472 = vunpack.c.1.s8 %v416
        %v473 = vunpack.c.1.s8 %v417
        %v474 = vunpack.c.1.s8 %v418
        %v475 = vunpack.c.2.s8 %v415
        %v476 = vunpack.c.2.s8 %v416
        %v477 = vunpack.c.2.s8 %v417
        %v478 = vunpack.c.2.s8 %v418
        %v479 = vunpack.c.3.s8 %v415
        %v480 = vunpack.c.3.s8 %v416
        %v481 = vunpack.c.3.s8 %v417
        %v482 = vunpack.c.3.s8 %v418
        %v483 = vpack.c.b16 %v420, %v419
        %v484 = vpack.c.b16 %v422, %v421
        %v485 = vpack.c.b8 %v484, %v483
        %v486 = vpack.c.b16 %v424, %v423
        %v487 = vpack.c.b16 %v426, %v425
        %v488 = vpack.c.b8 %v487, %v486
        %v489 = vpack.c.b16 %v428, %v427
        %v490 = vpack.c.b16 %v430, %v429
        %v491 = vpack.c.b8 %v490, %v489
        %v492 = vpack.c.b16 %v432, %v431
        %v493 = vpack.c.b16 %v434, %v433
        %v494 = vpack.c.b8 %v493, %v492
        %v495 = vpack.c.b16 %v436, %v435
        %v496 = vpack.c.b16 %v438, %v437
        %v497 = vpack.c.b8 %v496, %v495
        %v498 = vpack.c.b16 %v440, %v439
        %v499 = vpack.c.b16 %v442, %v441
        %v500 = vpack.c.b8 %v499, %v498
        %v501 = vpack.c.b16 %v444, %v443
        %v502 = vpack.c.b16 %v446, %v445
        %v503 = vpack.c.b8 %v502, %v501
        %v504 = vpack.c.b16 %v448, %v447
        %v505 = vpack.c.b16 %v450, %v449
        %v506 = vpack.c.b8 %v505, %v504
        %v507 = vpack.c.b16 %v452, %v451
        %v508 = vpack.c.b16 %v454, %v453
        %v509 = vpack.c.b8 %v508, %v507
        %v510 = vpack.c.b16 %v456, %v455
        %v511 = vpack.c.b16 %v458, %v457
        %v512 = vpack.c.b8 %v511, %v510
        %v513 = vpack.c.b16 %v460, %v459
        %v514 = vpack.c.b16 %v462, %v461
        %v515 = vpack.c.b8 %v514, %v513
        %v516 = vpack.c.b16 %v464, %v463
        %v517 = vpack.c.b16 %v466, %v465
        %v518 = vpack.c.b8 %v517, %v516
        %v519 = vpack.c.b16 %v468, %v467
        %v520 = vpack.c.b16 %v470, %v469
        %v521 = vpack.c.b8 %v520, %v519
        %v522 = vpack.c.b16 %v472, %v471
        %v523 = vpack.c.b16 %v474, %v473
        %v524 = vpack.c.b8 %v523, %v522
        %v525 = vpack.c.b16 %v476, %v475
        %v526 = vpack.c.b16 %v478, %v477
        %v527 = vpack.c.b8 %v526, %v525
        %v528 = vpack.c.b16 %v480, %v479
        %v529 = vpack.c.b16 %v482, %v481
        %v530 = vpack.c.b8 %v529, %v528
        %vm531 = vnez %v485
        %vm532 = vnez %v488
        %vm533 = vnez %v491
        %vm534 = vnez %v494
        %vm535 = vnez %v497
        %vm536 = vnez %v500
        %vm537 = vnez %v503
        %vm538 = vnez %v506
        %vm539 = vnez %v509
        %vm540 = vnez %v512
        %vm541 = vnez %v515
        %vm542 = vnez %v518
        %vm543 = vnez %v521
        %vm544 = vnez %v524
        %vm545 = vnez %v527
        %vm546 = vnez %v530
        %v547 = vsel %vm531, 16843009, 0
        %v548 = vsel %vm532, 16843009, 0
        %v549 = vsel %vm533, 16843009, 0
        %v550 = vsel %vm534, 16843009, 0
        %v551 = vsel %vm535, 16843009, 0
        %v552 = vsel %vm536, 16843009, 0
        %v553 = vsel %vm537, 16843009, 0
        %v554 = vsel %vm538, 16843009, 0
        %v555 = vsel %vm539, 16843009, 0
        %v556 = vsel %vm540, 16843009, 0
        %v557 = vsel %vm541, 16843009, 0
        %v558 = vsel %vm542, 16843009, 0
        %v559 = vsel %vm543, 16843009, 0
        %v560 = vsel %vm544, 16843009, 0
        %v561 = vsel %vm545, 16843009, 0
        %v562 = vsel %vm546, 16843009, 0
        %v563 = vunpack.c.0.s8 %v547
        %v564 = vunpack.c.1.s8 %v547
        %v565 = vunpack.c.2.s8 %v547
        %v566 = vunpack.c.3.s8 %v547
        %v567 = vunpack.c.0.s8 %v548
        %v568 = vunpack.c.1.s8 %v548
        %v569 = vunpack.c.2.s8 %v548
        %v570 = vunpack.c.3.s8 %v548
        %v571 = vunpack.c.0.s8 %v549
        %v572 = vunpack.c.1.s8 %v549
        %v573 = vunpack.c.2.s8 %v549
        %v574 = vunpack.c.3.s8 %v549
        %v575 = vunpack.c.0.s8 %v550
        %v576 = vunpack.c.1.s8 %v550
        %v577 = vunpack.c.2.s8 %v550
        %v578 = vunpack.c.3.s8 %v550
        %v579 = vunpack.c.0.s8 %v551
        %v580 = vunpack.c.1.s8 %v551
        %v581 = vunpack.c.2.s8 %v551
        %v582 = vunpack.c.3.s8 %v551
        %v583 = vunpack.c.0.s8 %v552
        %v584 = vunpack.c.1.s8 %v552
        %v585 = vunpack.c.2.s8 %v552
        %v586 = vunpack.c.3.s8 %v552
        %v587 = vunpack.c.0.s8 %v553
        %v588 = vunpack.c.1.s8 %v553
        %v589 = vunpack.c.2.s8 %v553
        %v590 = vunpack.c.3.s8 %v553
        %v591 = vunpack.c.0.s8 %v554
        %v592 = vunpack.c.1.s8 %v554
        %v593 = vunpack.c.2.s8 %v554
        %v594 = vunpack.c.3.s8 %v554
        %v595 = vunpack.c.0.s8 %v555
        %v596 = vunpack.c.1.s8 %v555
        %v597 = vunpack.c.2.s8 %v555
        %v598 = vunpack.c.3.s8 %v555
        %v599 = vunpack.c.0.s8 %v556
        %v600 = vunpack.c.1.s8 %v556
        %v601 = vunpack.c.2.s8 %v556
        %v602 = vunpack.c.3.s8 %v556
        %v603 = vunpack.c.0.s8 %v557
        %v604 = vunpack.c.1.s8 %v557
        %v605 = vunpack.c.2.s8 %v557
        %v606 = vunpack.c.3.s8 %v557
        %v607 = vunpack.c.0.s8 %v558
        %v608 = vunpack.c.1.s8 %v558
        %v609 = vunpack.c.2.s8 %v558
        %v610 = vunpack.c.3.s8 %v558
        %v611 = vunpack.c.0.s8 %v559
        %v612 = vunpack.c.1.s8 %v559
        %v613 = vunpack.c.2.s8 %v559
        %v614 = vunpack.c.3.s8 %v559
        %v615 = vunpack.c.0.s8 %v560
        %v616 = vunpack.c.1.s8 %v560
        %v617 = vunpack.c.2.s8 %v560
        %v618 = vunpack.c.3.s8 %v560
        %v619 = vunpack.c.0.s8 %v561
        %v620 = vunpack.c.1.s8 %v561
        %v621 = vunpack.c.2.s8 %v561
        %v622 = vunpack.c.3.s8 %v561
        %v623 = vunpack.c.0.s8 %v562
        %v624 = vunpack.c.1.s8 %v562
        %v625 = vunpack.c.2.s8 %v562
        %v626 = vunpack.c.3.s8 %v562
        %vm627 = vcmp.ne.s32.totalorder %v563, 0
        %vm628 = vcmp.ne.s32.totalorder %v564, 0
        %vm629 = vcmp.ne.s32.totalorder %v565, 0
        %vm630 = vcmp.ne.s32.totalorder %v566, 0
        %vm631 = vcmp.ne.s32.totalorder %v567, 0
        %vm632 = vcmp.ne.s32.totalorder %v568, 0
        %vm633 = vcmp.ne.s32.totalorder %v569, 0
        %vm634 = vcmp.ne.s32.totalorder %v570, 0
        %vm635 = vcmp.ne.s32.totalorder %v571, 0
        %vm636 = vcmp.ne.s32.totalorder %v572, 0
        %vm637 = vcmp.ne.s32.totalorder %v573, 0
        %vm638 = vcmp.ne.s32.totalorder %v574, 0
        %vm639 = vcmp.ne.s32.totalorder %v575, 0
        %vm640 = vcmp.ne.s32.totalorder %v576, 0
        %vm641 = vcmp.ne.s32.totalorder %v577, 0
        %vm642 = vcmp.ne.s32.totalorder %v578, 0
        %vm643 = vcmp.ne.s32.totalorder %v579, 0
        %vm644 = vcmp.ne.s32.totalorder %v580, 0
        %vm645 = vcmp.ne.s32.totalorder %v581, 0
        %vm646 = vcmp.ne.s32.totalorder %v582, 0
        %vm647 = vcmp.ne.s32.totalorder %v583, 0
        %vm648 = vcmp.ne.s32.totalorder %v584, 0
        %vm649 = vcmp.ne.s32.totalorder %v585, 0
        %vm650 = vcmp.ne.s32.totalorder %v586, 0
        %vm651 = vcmp.ne.s32.totalorder %v587, 0
        %vm652 = vcmp.ne.s32.totalorder %v588, 0
        %vm653 = vcmp.ne.s32.totalorder %v589, 0
        %vm654 = vcmp.ne.s32.totalorder %v590, 0
        %vm655 = vcmp.ne.s32.totalorder %v591, 0
        %vm656 = vcmp.ne.s32.totalorder %v592, 0
        %vm657 = vcmp.ne.s32.totalorder %v593, 0
        %vm658 = vcmp.ne.s32.totalorder %v594, 0
        %vm659 = vcmp.ne.s32.totalorder %v595, 0
        %vm660 = vcmp.ne.s32.totalorder %v596, 0
        %vm661 = vcmp.ne.s32.totalorder %v597, 0
        %vm662 = vcmp.ne.s32.totalorder %v598, 0
        %vm663 = vcmp.ne.s32.totalorder %v599, 0
        %vm664 = vcmp.ne.s32.totalorder %v600, 0
        %vm665 = vcmp.ne.s32.totalorder %v601, 0
        %vm666 = vcmp.ne.s32.totalorder %v602, 0
        %vm667 = vcmp.ne.s32.totalorder %v603, 0
        %vm668 = vcmp.ne.s32.totalorder %v604, 0
        %vm669 = vcmp.ne.s32.totalorder %v605, 0
        %vm670 = vcmp.ne.s32.totalorder %v606, 0
        %vm671 = vcmp.ne.s32.totalorder %v607, 0
        %vm672 = vcmp.ne.s32.totalorder %v608, 0
        %vm673 = vcmp.ne.s32.totalorder %v609, 0
        %vm674 = vcmp.ne.s32.totalorder %v610, 0
        %vm675 = vcmp.ne.s32.totalorder %v611, 0
        %vm676 = vcmp.ne.s32.totalorder %v612, 0
        %vm677 = vcmp.ne.s32.totalorder %v613, 0
        %vm678 = vcmp.ne.s32.totalorder %v614, 0
        %vm679 = vcmp.ne.s32.totalorder %v615, 0
        %vm680 = vcmp.ne.s32.totalorder %v616, 0
        %vm681 = vcmp.ne.s32.totalorder %v617, 0
        %vm682 = vcmp.ne.s32.totalorder %v618, 0
        %vm683 = vcmp.ne.s32.totalorder %v619, 0
        %vm684 = vcmp.ne.s32.totalorder %v620, 0
        %vm685 = vcmp.ne.s32.totalorder %v621, 0
        %vm686 = vcmp.ne.s32.totalorder %v622, 0
        %vm687 = vcmp.ne.s32.totalorder %v623, 0
        %vm688 = vcmp.ne.s32.totalorder %v624, 0
        %vm689 = vcmp.ne.s32.totalorder %v625, 0
        %vm690 = vcmp.ne.s32.totalorder %v626, 0
        %v691 = vsel %vm627, %v307, -1e+11
        %v692 = vsel %vm628, %v308, -1e+11
        %v693 = vsel %vm629, %v309, -1e+11
        %v694 = vsel %vm630, %v310, -1e+11
        %v695 = vsel %vm631, %v311, -1e+11
        %v696 = vsel %vm632, %v312, -1e+11
        %v697 = vsel %vm633, %v313, -1e+11
        %v698 = vsel %vm634, %v314, -1e+11
        %v699 = vsel %vm635, %v315, -1e+11
        %v700 = vsel %vm636, %v316, -1e+11
        %v701 = vsel %vm637, %v317, -1e+11
        %v702 = vsel %vm638, %v318, -1e+11
        %v703 = vsel %vm639, %v319, -1e+11
        %v704 = vsel %vm640, %v320, -1e+11
        %v705 = vsel %vm641, %v321, -1e+11
        %v706 = vsel %vm642, %v322, -1e+11
        %v707 = vsel %vm643, %v323, -1e+11
        %v708 = vsel %vm644, %v324, -1e+11
        %v709 = vsel %vm645, %v325, -1e+11
        %v710 = vsel %vm646, %v326, -1e+11
        %v711 = vsel %vm647, %v327, -1e+11
        %v712 = vsel %vm648, %v328, -1e+11
        %v713 = vsel %vm649, %v329, -1e+11
        %v714 = vsel %vm650, %v330, -1e+11
        %v715 = vsel %vm651, %v331, -1e+11
        %v716 = vsel %vm652, %v332, -1e+11
        %v717 = vsel %vm653, %v333, -1e+11
        %v718 = vsel %vm654, %v334, -1e+11
        %v719 = vsel %vm655, %v335, -1e+11
        %v720 = vsel %vm656, %v336, -1e+11
        %v721 = vsel %vm657, %v337, -1e+11
        %v722 = vsel %vm658, %v338, -1e+11
        %v723 = vsel %vm659, %v339, -1e+11
        %v724 = vsel %vm660, %v340, -1e+11
        %v725 = vsel %vm661, %v341, -1e+11
        %v726 = vsel %vm662, %v342, -1e+11
        %v727 = vsel %vm663, %v343, -1e+11
        %v728 = vsel %vm664, %v344, -1e+11
        %v729 = vsel %vm665, %v345, -1e+11
        %v730 = vsel %vm666, %v346, -1e+11
        %v731 = vsel %vm667, %v347, -1e+11
        %v732 = vsel %vm668, %v348, -1e+11
        %v733 = vsel %vm669, %v349, -1e+11
        %v734 = vsel %vm670, %v350, -1e+11
        %v735 = vsel %vm671, %v351, -1e+11
        %v736 = vsel %vm672, %v352, -1e+11
        %v737 = vsel %vm673, %v353, -1e+11
        %v738 = vsel %vm674, %v354, -1e+11
        %v739 = vsel %vm675, %v355, -1e+11
        %v740 = vsel %vm676, %v356, -1e+11
        %v741 = vsel %vm677, %v357, -1e+11
        %v742 = vsel %vm678, %v358, -1e+11
        %v743 = vsel %vm679, %v359, -1e+11
        %v744 = vsel %vm680, %v360, -1e+11
        %v745 = vsel %vm681, %v361, -1e+11
        %v746 = vsel %vm682, %v362, -1e+11
        %v747 = vsel %vm683, %v363, -1e+11
        %v748 = vsel %vm684, %v364, -1e+11
        %v749 = vsel %vm685, %v365, -1e+11
        %v750 = vsel %vm686, %v366, -1e+11
        %v751 = vsel %vm687, %v367, -1e+11
        %v752 = vsel %vm688, %v368, -1e+11
        %v753 = vsel %vm689, %v369, -1e+11
        %v754 = vsel %vm690, %v370, -1e+11
        %v755 = vlaneseq
        %v756 = vand.u32 %v755, 127
        %v757 = vadd.s32 %v756, 128
        %v758 = vadd.s32 %v756, 256
        %v759 = vadd.s32 %v756, 384
        %s760 = smul.u32 %s32, 512
        %v761 = vstv %s760
        %v762 = vadd.s32 %v756, %v761
        %v763 = vadd.s32 %v757, %v761
        %v764 = vadd.s32 %v758, %v761
        %v765 = vadd.s32 %v759, %v761
        %v766 = vmax.f32 %v691, %v692
        %v767 = vmax.f32 %v766, %v693
        %v768 = vmax.f32 %v767, %v694
        %769 = vmax.xlane.f32.xlu0 %v768
        %v770 = vpop.xlane.xlu0 %769
        %v771 = vmax.f32 %v695, %v696
        %v772 = vmax.f32 %v771, %v697
        %v773 = vmax.f32 %v772, %v698
        %774 = vmax.xlane.f32.xlu0 %v773
        %v775 = vpop.xlane.xlu0 %774
        %v776 = vmax.f32 %v699, %v700
        %v777 = vmax.f32 %v776, %v701
        %v778 = vmax.f32 %v777, %v702
        %779 = vmax.xlane.f32.xlu0 %v778
        %v780 = vpop.xlane.xlu0 %779
        %v781 = vmax.f32 %v703, %v704
        %v782 = vmax.f32 %v781, %v705
        %v783 = vmax.f32 %v782, %v706
        %784 = vmax.xlane.f32.xlu0 %v783
        %v785 = vpop.xlane.xlu0 %784
        %v786 = vmax.f32 %v707, %v708
        %v787 = vmax.f32 %v786, %v709
        %v788 = vmax.f32 %v787, %v710
        %789 = vmax.xlane.f32.xlu0 %v788
        %v790 = vpop.xlane.xlu0 %789
        %v791 = vmax.f32 %v711, %v712
        %v792 = vmax.f32 %v791, %v713
        %v793 = vmax.f32 %v792, %v714
        %794 = vmax.xlane.f32.xlu0 %v793
        %v795 = vpop.xlane.xlu0 %794
        %v796 = vmax.f32 %v715, %v716
        %v797 = vmax.f32 %v796, %v717
        %v798 = vmax.f32 %v797, %v718
        %799 = vmax.xlane.f32.xlu0 %v798
        %v800 = vpop.xlane.xlu0 %799
        %v801 = vmax.f32 %v719, %v720
        %v802 = vmax.f32 %v801, %v721
        %v803 = vmax.f32 %v802, %v722
        %804 = vmax.xlane.f32.xlu0 %v803
        %v805 = vpop.xlane.xlu0 %804
        %v806 = vmax.f32 %v723, %v724
        %v807 = vmax.f32 %v806, %v725
        %v808 = vmax.f32 %v807, %v726
        %809 = vmax.xlane.f32.xlu0 %v808
        %v810 = vpop.xlane.xlu0 %809
        %v811 = vmax.f32 %v727, %v728
        %v812 = vmax.f32 %v811, %v729
        %v813 = vmax.f32 %v812, %v730
        %814 = vmax.xlane.f32.xlu0 %v813
        %v815 = vpop.xlane.xlu0 %814
        %v816 = vmax.f32 %v731, %v732
        %v817 = vmax.f32 %v816, %v733
        %v818 = vmax.f32 %v817, %v734
        %819 = vmax.xlane.f32.xlu0 %v818
        %v820 = vpop.xlane.xlu0 %819
        %v821 = vmax.f32 %v735, %v736
        %v822 = vmax.f32 %v821, %v737
        %v823 = vmax.f32 %v822, %v738
        %824 = vmax.xlane.f32.xlu0 %v823
        %v825 = vpop.xlane.xlu0 %824
        %v826 = vmax.f32 %v739, %v740
        %v827 = vmax.f32 %v826, %v741
        %v828 = vmax.f32 %v827, %v742
        %829 = vmax.xlane.f32.xlu0 %v828
        %v830 = vpop.xlane.xlu0 %829
        %v831 = vmax.f32 %v743, %v744
        %v832 = vmax.f32 %v831, %v745
        %v833 = vmax.f32 %v832, %v746
        %834 = vmax.xlane.f32.xlu0 %v833
        %v835 = vpop.xlane.xlu0 %834
        %v836 = vmax.f32 %v747, %v748
        %v837 = vmax.f32 %v836, %v749
        %v838 = vmax.f32 %v837, %v750
        %839 = vmax.xlane.f32.xlu0 %v838
        %v840 = vpop.xlane.xlu0 %839
        %v841 = vmax.f32 %v751, %v752
        %v842 = vmax.f32 %v841, %v753
        %v843 = vmax.f32 %v842, %v754
        %844 = vmax.xlane.f32.xlu0 %v843
        %v845 = vpop.xlane.xlu0 %844
        %vm846 = vcmp.ge.f32.partialorder %v691, %v770
        %vm847 = vcmp.ge.f32.partialorder %v692, %v770
        %vm848 = vcmp.ge.f32.partialorder %v693, %v770
        %vm849 = vcmp.ge.f32.partialorder %v694, %v770
        %vm850 = vcmp.ge.f32.partialorder %v695, %v775
        %vm851 = vcmp.ge.f32.partialorder %v696, %v775
        %vm852 = vcmp.ge.f32.partialorder %v697, %v775
        %vm853 = vcmp.ge.f32.partialorder %v698, %v775
        %vm854 = vcmp.ge.f32.partialorder %v699, %v780
        %vm855 = vcmp.ge.f32.partialorder %v700, %v780
        %vm856 = vcmp.ge.f32.partialorder %v701, %v780
        %vm857 = vcmp.ge.f32.partialorder %v702, %v780
        %vm858 = vcmp.ge.f32.partialorder %v703, %v785
        %vm859 = vcmp.ge.f32.partialorder %v704, %v785
        %vm860 = vcmp.ge.f32.partialorder %v705, %v785
        %vm861 = vcmp.ge.f32.partialorder %v706, %v785
        %vm862 = vcmp.ge.f32.partialorder %v707, %v790
        %vm863 = vcmp.ge.f32.partialorder %v708, %v790
        %vm864 = vcmp.ge.f32.partialorder %v709, %v790
        %vm865 = vcmp.ge.f32.partialorder %v710, %v790
        %vm866 = vcmp.ge.f32.partialorder %v711, %v795
        %vm867 = vcmp.ge.f32.partialorder %v712, %v795
        %vm868 = vcmp.ge.f32.partialorder %v713, %v795
        %vm869 = vcmp.ge.f32.partialorder %v714, %v795
        %vm870 = vcmp.ge.f32.partialorder %v715, %v800
        %vm871 = vcmp.ge.f32.partialorder %v716, %v800
        %vm872 = vcmp.ge.f32.partialorder %v717, %v800
        %vm873 = vcmp.ge.f32.partialorder %v718, %v800
        %vm874 = vcmp.ge.f32.partialorder %v719, %v805
        %vm875 = vcmp.ge.f32.partialorder %v720, %v805
        %vm876 = vcmp.ge.f32.partialorder %v721, %v805
        %vm877 = vcmp.ge.f32.partialorder %v722, %v805
        %vm878 = vcmp.ge.f32.partialorder %v723, %v810
        %vm879 = vcmp.ge.f32.partialorder %v724, %v810
        %vm880 = vcmp.ge.f32.partialorder %v725, %v810
        %vm881 = vcmp.ge.f32.partialorder %v726, %v810
        %vm882 = vcmp.ge.f32.partialorder %v727, %v815
        %vm883 = vcmp.ge.f32.partialorder %v728, %v815
        %vm884 = vcmp.ge.f32.partialorder %v729, %v815
        %vm885 = vcmp.ge.f32.partialorder %v730, %v815
        %vm886 = vcmp.ge.f32.partialorder %v731, %v820
        %vm887 = vcmp.ge.f32.partialorder %v732, %v820
        %vm888 = vcmp.ge.f32.partialorder %v733, %v820
        %vm889 = vcmp.ge.f32.partialorder %v734, %v820
        %vm890 = vcmp.ge.f32.partialorder %v735, %v825
        %vm891 = vcmp.ge.f32.partialorder %v736, %v825
        %vm892 = vcmp.ge.f32.partialorder %v737, %v825
        %vm893 = vcmp.ge.f32.partialorder %v738, %v825
        %vm894 = vcmp.ge.f32.partialorder %v739, %v830
        %vm895 = vcmp.ge.f32.partialorder %v740, %v830
        %vm896 = vcmp.ge.f32.partialorder %v741, %v830
        %vm897 = vcmp.ge.f32.partialorder %v742, %v830
        %vm898 = vcmp.ge.f32.partialorder %v743, %v835
        %vm899 = vcmp.ge.f32.partialorder %v744, %v835
        %vm900 = vcmp.ge.f32.partialorder %v745, %v835
        %vm901 = vcmp.ge.f32.partialorder %v746, %v835
        %vm902 = vcmp.ge.f32.partialorder %v747, %v840
        %vm903 = vcmp.ge.f32.partialorder %v748, %v840
        %vm904 = vcmp.ge.f32.partialorder %v749, %v840
        %vm905 = vcmp.ge.f32.partialorder %v750, %v840
        %vm906 = vcmp.ge.f32.partialorder %v751, %v845
        %vm907 = vcmp.ge.f32.partialorder %v752, %v845
        %vm908 = vcmp.ge.f32.partialorder %v753, %v845
        %vm909 = vcmp.ge.f32.partialorder %v754, %v845
        %v910 = vsel %vm846, %v762, 2147483647
        %v911 = vsel %vm847, %v763, 2147483647
        %v912 = vsel %vm848, %v764, 2147483647
        %v913 = vsel %vm849, %v765, 2147483647
        %v914 = vsel %vm850, %v762, 2147483647
        %v915 = vsel %vm851, %v763, 2147483647
        %v916 = vsel %vm852, %v764, 2147483647
        %v917 = vsel %vm853, %v765, 2147483647
        %v918 = vsel %vm854, %v762, 2147483647
        %v919 = vsel %vm855, %v763, 2147483647
        %v920 = vsel %vm856, %v764, 2147483647
        %v921 = vsel %vm857, %v765, 2147483647
        %v922 = vsel %vm858, %v762, 2147483647
        %v923 = vsel %vm859, %v763, 2147483647
        %v924 = vsel %vm860, %v764, 2147483647
        %v925 = vsel %vm861, %v765, 2147483647
        %v926 = vsel %vm862, %v762, 2147483647
        %v927 = vsel %vm863, %v763, 2147483647
        %v928 = vsel %vm864, %v764, 2147483647
        %v929 = vsel %vm865, %v765, 2147483647
        %v930 = vsel %vm866, %v762, 2147483647
        %v931 = vsel %vm867, %v763, 2147483647
        %v932 = vsel %vm868, %v764, 2147483647
        %v933 = vsel %vm869, %v765, 2147483647
        %v934 = vsel %vm870, %v762, 2147483647
        %v935 = vsel %vm871, %v763, 2147483647
        %v936 = vsel %vm872, %v764, 2147483647
        %v937 = vsel %vm873, %v765, 2147483647
        %v938 = vsel %vm874, %v762, 2147483647
        %v939 = vsel %vm875, %v763, 2147483647
        %v940 = vsel %vm876, %v764, 2147483647
        %v941 = vsel %vm877, %v765, 2147483647
        %v942 = vsel %vm878, %v762, 2147483647
        %v943 = vsel %vm879, %v763, 2147483647
        %v944 = vsel %vm880, %v764, 2147483647
        %v945 = vsel %vm881, %v765, 2147483647
        %v946 = vsel %vm882, %v762, 2147483647
        %v947 = vsel %vm883, %v763, 2147483647
        %v948 = vsel %vm884, %v764, 2147483647
        %v949 = vsel %vm885, %v765, 2147483647
        %v950 = vsel %vm886, %v762, 2147483647
        %v951 = vsel %vm887, %v763, 2147483647
        %v952 = vsel %vm888, %v764, 2147483647
        %v953 = vsel %vm889, %v765, 2147483647
        %v954 = vsel %vm890, %v762, 2147483647
        %v955 = vsel %vm891, %v763, 2147483647
        %v956 = vsel %vm892, %v764, 2147483647
        %v957 = vsel %vm893, %v765, 2147483647
        %v958 = vsel %vm894, %v762, 2147483647
        %v959 = vsel %vm895, %v763, 2147483647
        %v960 = vsel %vm896, %v764, 2147483647
        %v961 = vsel %vm897, %v765, 2147483647
        %v962 = vsel %vm898, %v762, 2147483647
        %v963 = vsel %vm899, %v763, 2147483647
        %v964 = vsel %vm900, %v764, 2147483647
        %v965 = vsel %vm901, %v765, 2147483647
        %v966 = vsel %vm902, %v762, 2147483647
        %v967 = vsel %vm903, %v763, 2147483647
        %v968 = vsel %vm904, %v764, 2147483647
        %v969 = vsel %vm905, %v765, 2147483647
        %v970 = vsel %vm906, %v762, 2147483647
        %v971 = vsel %vm907, %v763, 2147483647
        %v972 = vsel %vm908, %v764, 2147483647
        %v973 = vsel %vm909, %v765, 2147483647
        %vm974 = vcmp.lt.s32.totalorder %v910, %v911
        %v975 = vsel %vm974, %v910, %v911
        %vm976 = vcmp.lt.s32.totalorder %v975, %v912
        %v977 = vsel %vm976, %v975, %v912
        %vm978 = vcmp.lt.s32.totalorder %v977, %v913
        %v979 = vsel %vm978, %v977, %v913
        %v980 = vand.u32 %v979, 65535
        %v981 = vshra.s32 %v979, 16
        %v982 = vcvt.s32.f32 %v980
        %v983 = vcvt.s32.f32 %v981
        %984 = vmin.xlane.f32.xlu0 %v983
        %v985 = vpop.xlane.xlu0 %984
        %vm986 = vcmp.eq.f32.partialorder %v983, %v985
        %v987 = vsel %vm986, %v982, inf
        %988 = vmin.xlane.f32.xlu0 %v987
        %v989 = vpop.xlane.xlu0 %988
        %v990 = vcvt.f32.s32 %v989
        %v991 = vcvt.f32.s32 %v985
        %v992 = vshll.u32 %v991, 16
        %v993 = vadd.s32 %v992, %v990
        %vm994 = vcmp.lt.s32.totalorder %v914, %v915
        %v995 = vsel %vm994, %v914, %v915
        %vm996 = vcmp.lt.s32.totalorder %v995, %v916
        %v997 = vsel %vm996, %v995, %v916
        %vm998 = vcmp.lt.s32.totalorder %v997, %v917
        %v999 = vsel %vm998, %v997, %v917
        %v1000 = vand.u32 %v999, 65535
        %v1001 = vshra.s32 %v999, 16
        %v1002 = vcvt.s32.f32 %v1000
        %v1003 = vcvt.s32.f32 %v1001
        %1004 = vmin.xlane.f32.xlu0 %v1003
        %v1005 = vpop.xlane.xlu0 %1004
        %vm1006 = vcmp.eq.f32.partialorder %v1003, %v1005
        %v1007 = vsel %vm1006, %v1002, inf
        %1008 = vmin.xlane.f32.xlu0 %v1007
        %v1009 = vpop.xlane.xlu0 %1008
        %v1010 = vcvt.f32.s32 %v1009
        %v1011 = vcvt.f32.s32 %v1005
        %v1012 = vshll.u32 %v1011, 16
        %v1013 = vadd.s32 %v1012, %v1010
        %vm1014 = vcmp.lt.s32.totalorder %v918, %v919
        %v1015 = vsel %vm1014, %v918, %v919
        %vm1016 = vcmp.lt.s32.totalorder %v1015, %v920
        %v1017 = vsel %vm1016, %v1015, %v920
        %vm1018 = vcmp.lt.s32.totalorder %v1017, %v921
        %v1019 = vsel %vm1018, %v1017, %v921
        %v1020 = vand.u32 %v1019, 65535
        %v1021 = vshra.s32 %v1019, 16
        %v1022 = vcvt.s32.f32 %v1020
        %v1023 = vcvt.s32.f32 %v1021
        %1024 = vmin.xlane.f32.xlu0 %v1023
        %v1025 = vpop.xlane.xlu0 %1024
        %vm1026 = vcmp.eq.f32.partialorder %v1023, %v1025
        %v1027 = vsel %vm1026, %v1022, inf
        %1028 = vmin.xlane.f32.xlu0 %v1027
        %v1029 = vpop.xlane.xlu0 %1028
        %v1030 = vcvt.f32.s32 %v1029
        %v1031 = vcvt.f32.s32 %v1025
        %v1032 = vshll.u32 %v1031, 16
        %v1033 = vadd.s32 %v1032, %v1030
        %vm1034 = vcmp.lt.s32.totalorder %v922, %v923
        %v1035 = vsel %vm1034, %v922, %v923
        %vm1036 = vcmp.lt.s32.totalorder %v1035, %v924
        %v1037 = vsel %vm1036, %v1035, %v924
        %vm1038 = vcmp.lt.s32.totalorder %v1037, %v925
        %v1039 = vsel %vm1038, %v1037, %v925
        %v1040 = vand.u32 %v1039, 65535
        %v1041 = vshra.s32 %v1039, 16
        %v1042 = vcvt.s32.f32 %v1040
        %v1043 = vcvt.s32.f32 %v1041
        %1044 = vmin.xlane.f32.xlu0 %v1043
        %v1045 = vpop.xlane.xlu0 %1044
        %vm1046 = vcmp.eq.f32.partialorder %v1043, %v1045
        %v1047 = vsel %vm1046, %v1042, inf
        %1048 = vmin.xlane.f32.xlu0 %v1047
        %v1049 = vpop.xlane.xlu0 %1048
        %v1050 = vcvt.f32.s32 %v1049
        %v1051 = vcvt.f32.s32 %v1045
        %v1052 = vshll.u32 %v1051, 16
        %v1053 = vadd.s32 %v1052, %v1050
        %vm1054 = vcmp.lt.s32.totalorder %v926, %v927
        %v1055 = vsel %vm1054, %v926, %v927
        %vm1056 = vcmp.lt.s32.totalorder %v1055, %v928
        %v1057 = vsel %vm1056, %v1055, %v928
        %vm1058 = vcmp.lt.s32.totalorder %v1057, %v929
        %v1059 = vsel %vm1058, %v1057, %v929
        %v1060 = vand.u32 %v1059, 65535
        %v1061 = vshra.s32 %v1059, 16
        %v1062 = vcvt.s32.f32 %v1060
        %v1063 = vcvt.s32.f32 %v1061
        %1064 = vmin.xlane.f32.xlu0 %v1063
        %v1065 = vpop.xlane.xlu0 %1064
        %vm1066 = vcmp.eq.f32.partialorder %v1063, %v1065
        %v1067 = vsel %vm1066, %v1062, inf
        %1068 = vmin.xlane.f32.xlu0 %v1067
        %v1069 = vpop.xlane.xlu0 %1068
        %v1070 = vcvt.f32.s32 %v1069
        %v1071 = vcvt.f32.s32 %v1065
        %v1072 = vshll.u32 %v1071, 16
        %v1073 = vadd.s32 %v1072, %v1070
        %vm1074 = vcmp.lt.s32.totalorder %v930, %v931
        %v1075 = vsel %vm1074, %v930, %v931
        %vm1076 = vcmp.lt.s32.totalorder %v1075, %v932
        %v1077 = vsel %vm1076, %v1075, %v932
        %vm1078 = vcmp.lt.s32.totalorder %v1077, %v933
        %v1079 = vsel %vm1078, %v1077, %v933
        %v1080 = vand.u32 %v1079, 65535
        %v1081 = vshra.s32 %v1079, 16
        %v1082 = vcvt.s32.f32 %v1080
        %v1083 = vcvt.s32.f32 %v1081
        %1084 = vmin.xlane.f32.xlu0 %v1083
        %v1085 = vpop.xlane.xlu0 %1084
        %vm1086 = vcmp.eq.f32.partialorder %v1083, %v1085
        %v1087 = vsel %vm1086, %v1082, inf
        %1088 = vmin.xlane.f32.xlu0 %v1087
        %v1089 = vpop.xlane.xlu0 %1088
        %v1090 = vcvt.f32.s32 %v1089
        %v1091 = vcvt.f32.s32 %v1085
        %v1092 = vshll.u32 %v1091, 16
        %v1093 = vadd.s32 %v1092, %v1090
        %vm1094 = vcmp.lt.s32.totalorder %v934, %v935
        %v1095 = vsel %vm1094, %v934, %v935
        %vm1096 = vcmp.lt.s32.totalorder %v1095, %v936
        %v1097 = vsel %vm1096, %v1095, %v936
        %vm1098 = vcmp.lt.s32.totalorder %v1097, %v937
        %v1099 = vsel %vm1098, %v1097, %v937
        %v1100 = vand.u32 %v1099, 65535
        %v1101 = vshra.s32 %v1099, 16
        %v1102 = vcvt.s32.f32 %v1100
        %v1103 = vcvt.s32.f32 %v1101
        %1104 = vmin.xlane.f32.xlu0 %v1103
        %v1105 = vpop.xlane.xlu0 %1104
        %vm1106 = vcmp.eq.f32.partialorder %v1103, %v1105
        %v1107 = vsel %vm1106, %v1102, inf
        %1108 = vmin.xlane.f32.xlu0 %v1107
        %v1109 = vpop.xlane.xlu0 %1108
        %v1110 = vcvt.f32.s32 %v1109
        %v1111 = vcvt.f32.s32 %v1105
        %v1112 = vshll.u32 %v1111, 16
        %v1113 = vadd.s32 %v1112, %v1110
        %vm1114 = vcmp.lt.s32.totalorder %v938, %v939
        %v1115 = vsel %vm1114, %v938, %v939
        %vm1116 = vcmp.lt.s32.totalorder %v1115, %v940
        %v1117 = vsel %vm1116, %v1115, %v940
        %vm1118 = vcmp.lt.s32.totalorder %v1117, %v941
        %v1119 = vsel %vm1118, %v1117, %v941
        %v1120 = vand.u32 %v1119, 65535
        %v1121 = vshra.s32 %v1119, 16
        %v1122 = vcvt.s32.f32 %v1120
        %v1123 = vcvt.s32.f32 %v1121
        %1124 = vmin.xlane.f32.xlu0 %v1123
        %v1125 = vpop.xlane.xlu0 %1124
        %vm1126 = vcmp.eq.f32.partialorder %v1123, %v1125
        %v1127 = vsel %vm1126, %v1122, inf
        %1128 = vmin.xlane.f32.xlu0 %v1127
        %v1129 = vpop.xlane.xlu0 %1128
        %v1130 = vcvt.f32.s32 %v1129
        %v1131 = vcvt.f32.s32 %v1125
        %v1132 = vshll.u32 %v1131, 16
        %v1133 = vadd.s32 %v1132, %v1130
        %vm1134 = vcmp.lt.s32.totalorder %v942, %v943
        %v1135 = vsel %vm1134, %v942, %v943
        %vm1136 = vcmp.lt.s32.totalorder %v1135, %v944
        %v1137 = vsel %vm1136, %v1135, %v944
        %vm1138 = vcmp.lt.s32.totalorder %v1137, %v945
        %v1139 = vsel %vm1138, %v1137, %v945
        %v1140 = vand.u32 %v1139, 65535
        %v1141 = vshra.s32 %v1139, 16
        %v1142 = vcvt.s32.f32 %v1140
        %v1143 = vcvt.s32.f32 %v1141
        %1144 = vmin.xlane.f32.xlu0 %v1143
        %v1145 = vpop.xlane.xlu0 %1144
        %vm1146 = vcmp.eq.f32.partialorder %v1143, %v1145
        %v1147 = vsel %vm1146, %v1142, inf
        %1148 = vmin.xlane.f32.xlu0 %v1147
        %v1149 = vpop.xlane.xlu0 %1148
        %v1150 = vcvt.f32.s32 %v1149
        %v1151 = vcvt.f32.s32 %v1145
        %v1152 = vshll.u32 %v1151, 16
        %v1153 = vadd.s32 %v1152, %v1150
        %vm1154 = vcmp.lt.s32.totalorder %v946, %v947
        %v1155 = vsel %vm1154, %v946, %v947
        %vm1156 = vcmp.lt.s32.totalorder %v1155, %v948
        %v1157 = vsel %vm1156, %v1155, %v948
        %vm1158 = vcmp.lt.s32.totalorder %v1157, %v949
        %v1159 = vsel %vm1158, %v1157, %v949
        %v1160 = vand.u32 %v1159, 65535
        %v1161 = vshra.s32 %v1159, 16
        %v1162 = vcvt.s32.f32 %v1160
        %v1163 = vcvt.s32.f32 %v1161
        %1164 = vmin.xlane.f32.xlu0 %v1163
        %v1165 = vpop.xlane.xlu0 %1164
        %vm1166 = vcmp.eq.f32.partialorder %v1163, %v1165
        %v1167 = vsel %vm1166, %v1162, inf
        %1168 = vmin.xlane.f32.xlu0 %v1167
        %v1169 = vpop.xlane.xlu0 %1168
        %v1170 = vcvt.f32.s32 %v1169
        %v1171 = vcvt.f32.s32 %v1165
        %v1172 = vshll.u32 %v1171, 16
        %v1173 = vadd.s32 %v1172, %v1170
        %vm1174 = vcmp.lt.s32.totalorder %v950, %v951
        %v1175 = vsel %vm1174, %v950, %v951
        %vm1176 = vcmp.lt.s32.totalorder %v1175, %v952
        %v1177 = vsel %vm1176, %v1175, %v952
        %vm1178 = vcmp.lt.s32.totalorder %v1177, %v953
        %v1179 = vsel %vm1178, %v1177, %v953
        %v1180 = vand.u32 %v1179, 65535
        %v1181 = vshra.s32 %v1179, 16
        %v1182 = vcvt.s32.f32 %v1180
        %v1183 = vcvt.s32.f32 %v1181
        %1184 = vmin.xlane.f32.xlu0 %v1183
        %v1185 = vpop.xlane.xlu0 %1184
        %vm1186 = vcmp.eq.f32.partialorder %v1183, %v1185
        %v1187 = vsel %vm1186, %v1182, inf
        %1188 = vmin.xlane.f32.xlu0 %v1187
        %v1189 = vpop.xlane.xlu0 %1188
        %v1190 = vcvt.f32.s32 %v1189
        %v1191 = vcvt.f32.s32 %v1185
        %v1192 = vshll.u32 %v1191, 16
        %v1193 = vadd.s32 %v1192, %v1190
        %vm1194 = vcmp.lt.s32.totalorder %v954, %v955
        %v1195 = vsel %vm1194, %v954, %v955
        %vm1196 = vcmp.lt.s32.totalorder %v1195, %v956
        %v1197 = vsel %vm1196, %v1195, %v956
        %vm1198 = vcmp.lt.s32.totalorder %v1197, %v957
        %v1199 = vsel %vm1198, %v1197, %v957
        %v1200 = vand.u32 %v1199, 65535
        %v1201 = vshra.s32 %v1199, 16
        %v1202 = vcvt.s32.f32 %v1200
        %v1203 = vcvt.s32.f32 %v1201
        %1204 = vmin.xlane.f32.xlu0 %v1203
        %v1205 = vpop.xlane.xlu0 %1204
        %vm1206 = vcmp.eq.f32.partialorder %v1203, %v1205
        %v1207 = vsel %vm1206, %v1202, inf
        %1208 = vmin.xlane.f32.xlu0 %v1207
        %v1209 = vpop.xlane.xlu0 %1208
        %v1210 = vcvt.f32.s32 %v1209
        %v1211 = vcvt.f32.s32 %v1205
        %v1212 = vshll.u32 %v1211, 16
        %v1213 = vadd.s32 %v1212, %v1210
        %vm1214 = vcmp.lt.s32.totalorder %v958, %v959
        %v1215 = vsel %vm1214, %v958, %v959
        %vm1216 = vcmp.lt.s32.totalorder %v1215, %v960
        %v1217 = vsel %vm1216, %v1215, %v960
        %vm1218 = vcmp.lt.s32.totalorder %v1217, %v961
        %v1219 = vsel %vm1218, %v1217, %v961
        %v1220 = vand.u32 %v1219, 65535
        %v1221 = vshra.s32 %v1219, 16
        %v1222 = vcvt.s32.f32 %v1220
        %v1223 = vcvt.s32.f32 %v1221
        %1224 = vmin.xlane.f32.xlu0 %v1223
        %v1225 = vpop.xlane.xlu0 %1224
        %vm1226 = vcmp.eq.f32.partialorder %v1223, %v1225
        %v1227 = vsel %vm1226, %v1222, inf
        %1228 = vmin.xlane.f32.xlu0 %v1227
        %v1229 = vpop.xlane.xlu0 %1228
        %v1230 = vcvt.f32.s32 %v1229
        %v1231 = vcvt.f32.s32 %v1225
        %v1232 = vshll.u32 %v1231, 16
        %v1233 = vadd.s32 %v1232, %v1230
        %vm1234 = vcmp.lt.s32.totalorder %v962, %v963
        %v1235 = vsel %vm1234, %v962, %v963
        %vm1236 = vcmp.lt.s32.totalorder %v1235, %v964
        %v1237 = vsel %vm1236, %v1235, %v964
        %vm1238 = vcmp.lt.s32.totalorder %v1237, %v965
        %v1239 = vsel %vm1238, %v1237, %v965
        %v1240 = vand.u32 %v1239, 65535
        %v1241 = vshra.s32 %v1239, 16
        %v1242 = vcvt.s32.f32 %v1240
        %v1243 = vcvt.s32.f32 %v1241
        %1244 = vmin.xlane.f32.xlu0 %v1243
        %v1245 = vpop.xlane.xlu0 %1244
        %vm1246 = vcmp.eq.f32.partialorder %v1243, %v1245
        %v1247 = vsel %vm1246, %v1242, inf
        %1248 = vmin.xlane.f32.xlu0 %v1247
        %v1249 = vpop.xlane.xlu0 %1248
        %v1250 = vcvt.f32.s32 %v1249
        %v1251 = vcvt.f32.s32 %v1245
        %v1252 = vshll.u32 %v1251, 16
        %v1253 = vadd.s32 %v1252, %v1250
        %vm1254 = vcmp.lt.s32.totalorder %v966, %v967
        %v1255 = vsel %vm1254, %v966, %v967
        %vm1256 = vcmp.lt.s32.totalorder %v1255, %v968
        %v1257 = vsel %vm1256, %v1255, %v968
        %vm1258 = vcmp.lt.s32.totalorder %v1257, %v969
        %v1259 = vsel %vm1258, %v1257, %v969
        %v1260 = vand.u32 %v1259, 65535
        %v1261 = vshra.s32 %v1259, 16
        %v1262 = vcvt.s32.f32 %v1260
        %v1263 = vcvt.s32.f32 %v1261
        %1264 = vmin.xlane.f32.xlu0 %v1263
        %v1265 = vpop.xlane.xlu0 %1264
        %vm1266 = vcmp.eq.f32.partialorder %v1263, %v1265
        %v1267 = vsel %vm1266, %v1262, inf
        %1268 = vmin.xlane.f32.xlu0 %v1267
        %v1269 = vpop.xlane.xlu0 %1268
        %v1270 = vcvt.f32.s32 %v1269
        %v1271 = vcvt.f32.s32 %v1265
        %v1272 = vshll.u32 %v1271, 16
        %v1273 = vadd.s32 %v1272, %v1270
        %vm1274 = vcmp.lt.s32.totalorder %v970, %v971
        %v1275 = vsel %vm1274, %v970, %v971
        %vm1276 = vcmp.lt.s32.totalorder %v1275, %v972
        %v1277 = vsel %vm1276, %v1275, %v972
        %vm1278 = vcmp.lt.s32.totalorder %v1277, %v973
        %v1279 = vsel %vm1278, %v1277, %v973
        %v1280 = vand.u32 %v1279, 65535
        %v1281 = vshra.s32 %v1279, 16
        %v1282 = vcvt.s32.f32 %v1280
        %v1283 = vcvt.s32.f32 %v1281
        %1284 = vmin.xlane.f32.xlu0 %v1283
        %v1285 = vpop.xlane.xlu0 %1284
        %vm1286 = vcmp.eq.f32.partialorder %v1283, %v1285
        %v1287 = vsel %vm1286, %v1282, inf
        %1288 = vmin.xlane.f32.xlu0 %v1287
        %v1289 = vpop.xlane.xlu0 %1288
        %v1290 = vcvt.f32.s32 %v1289
        %v1291 = vcvt.f32.s32 %v1285
        %v1292 = vshll.u32 %v1291, 16
        %v1293 = vadd.s32 %v1292, %v1290
        %v1294 = vld [vmem:[#allocation2] sm:$0xff]
        %v1295 = vld [vmem:[#allocation2 + $0x8] sm:$0xff]
        %v1296 = vld [vmem:[#allocation2 + $0x10] sm:$0xff]
        %v1297 = vld [vmem:[#allocation2 + $0x18] sm:$0xff]
        %v1298 = vld [vmem:[#allocation2 + $0x20] sm:$0xff]
        %v1299 = vld [vmem:[#allocation2 + $0x28] sm:$0xff]
        %v1300 = vld [vmem:[#allocation2 + $0x30] sm:$0xff]
        %v1301 = vld [vmem:[#allocation2 + $0x38] sm:$0xff]
        %v1302 = vld [vmem:[#allocation2 + $0x40] sm:$0xff]
        %v1303 = vld [vmem:[#allocation2 + $0x48] sm:$0xff]
        %v1304 = vld [vmem:[#allocation2 + $0x50] sm:$0xff]
        %v1305 = vld [vmem:[#allocation2 + $0x58] sm:$0xff]
        %v1306 = vld [vmem:[#allocation2 + $0x60] sm:$0xff]
        %v1307 = vld [vmem:[#allocation2 + $0x68] sm:$0xff]
        %v1308 = vld [vmem:[#allocation2 + $0x70] sm:$0xff]
        %v1309 = vld [vmem:[#allocation2 + $0x78] sm:$0xff]
        %vm1310 = vcmp.gt.f32.partialorder %v770, %v1294
        %vm1311 = vcmp.gt.f32.partialorder %v775, %v1295
        %vm1312 = vcmp.gt.f32.partialorder %v780, %v1296
        %vm1313 = vcmp.gt.f32.partialorder %v785, %v1297
        %vm1314 = vcmp.gt.f32.partialorder %v790, %v1298
        %vm1315 = vcmp.gt.f32.partialorder %v795, %v1299
        %vm1316 = vcmp.gt.f32.partialorder %v800, %v1300
        %vm1317 = vcmp.gt.f32.partialorder %v805, %v1301
        %vm1318 = vcmp.gt.f32.partialorder %v810, %v1302
        %vm1319 = vcmp.gt.f32.partialorder %v815, %v1303
        %vm1320 = vcmp.gt.f32.partialorder %v820, %v1304
        %vm1321 = vcmp.gt.f32.partialorder %v825, %v1305
        %vm1322 = vcmp.gt.f32.partialorder %v830, %v1306
        %vm1323 = vcmp.gt.f32.partialorder %v835, %v1307
        %vm1324 = vcmp.gt.f32.partialorder %v840, %v1308
        %vm1325 = vcmp.gt.f32.partialorder %v845, %v1309
        %v1326 = vld [vmem:[#allocation3] sm:$0xff]
        %v1327 = vld [vmem:[#allocation3 + $0x8] sm:$0xff]
        %v1328 = vld [vmem:[#allocation3 + $0x10] sm:$0xff]
        %v1329 = vld [vmem:[#allocation3 + $0x18] sm:$0xff]
        %v1330 = vld [vmem:[#allocation3 + $0x20] sm:$0xff]
        %v1331 = vld [vmem:[#allocation3 + $0x28] sm:$0xff]
        %v1332 = vld [vmem:[#allocation3 + $0x30] sm:$0xff]
        %v1333 = vld [vmem:[#allocation3 + $0x38] sm:$0xff]
        %v1334 = vld [vmem:[#allocation3 + $0x40] sm:$0xff]
        %v1335 = vld [vmem:[#allocation3 + $0x48] sm:$0xff]
        %v1336 = vld [vmem:[#allocation3 + $0x50] sm:$0xff]
        %v1337 = vld [vmem:[#allocation3 + $0x58] sm:$0xff]
        %v1338 = vld [vmem:[#allocation3 + $0x60] sm:$0xff]
        %v1339 = vld [vmem:[#allocation3 + $0x68] sm:$0xff]
        %v1340 = vld [vmem:[#allocation3 + $0x70] sm:$0xff]
        %v1341 = vld [vmem:[#allocation3 + $0x78] sm:$0xff]
        %v1342 = vsel %vm1310, %v993, %v1326
        %v1343 = vsel %vm1311, %v1013, %v1327
        %v1344 = vsel %vm1312, %v1033, %v1328
        %v1345 = vsel %vm1313, %v1053, %v1329
        %v1346 = vsel %vm1314, %v1073, %v1330
        %v1347 = vsel %vm1315, %v1093, %v1331
        %v1348 = vsel %vm1316, %v1113, %v1332
        %v1349 = vsel %vm1317, %v1133, %v1333
        %v1350 = vsel %vm1318, %v1153, %v1334
        %v1351 = vsel %vm1319, %v1173, %v1335
        %v1352 = vsel %vm1320, %v1193, %v1336
        %v1353 = vsel %vm1321, %v1213, %v1337
        %v1354 = vsel %vm1322, %v1233, %v1338
        %v1355 = vsel %vm1323, %v1253, %v1339
        %v1356 = vsel %vm1324, %v1273, %v1340
        %v1357 = vsel %vm1325, %v1293, %v1341
        %vm1358 = vcmask 7168
        %1359 = vst.msk [vmem:[#allocation3] sm:$0xff] %vm1358, %v1342
        %1360 = vst.msk [vmem:[#allocation3 + $0x8] sm:$0xff] %vm1358, %v1343
        %1361 = vst.msk [vmem:[#allocation3 + $0x10] sm:$0xff] %vm1358, %v1344
        %1362 = vst.msk [vmem:[#allocation3 + $0x18] sm:$0xff] %vm1358, %v1345
        %1363 = vst.msk [vmem:[#allocation3 + $0x20] sm:$0xff] %vm1358, %v1346
        %1364 = vst.msk [vmem:[#allocation3 + $0x28] sm:$0xff] %vm1358, %v1347
        %1365 = vst.msk [vmem:[#allocation3 + $0x30] sm:$0xff] %vm1358, %v1348
        %1366 = vst.msk [vmem:[#allocation3 + $0x38] sm:$0xff] %vm1358, %v1349
        %1367 = vst.msk [vmem:[#allocation3 + $0x40] sm:$0xff] %vm1358, %v1350
        %1368 = vst.msk [vmem:[#allocation3 + $0x48] sm:$0xff] %vm1358, %v1351
        %1369 = vst.msk [vmem:[#allocation3 + $0x50] sm:$0xff] %vm1358, %v1352
        %1370 = vst.msk [vmem:[#allocation3 + $0x58] sm:$0xff] %vm1358, %v1353
        %1371 = vst.msk [vmem:[#allocation3 + $0x60] sm:$0xff] %vm1358, %v1354
        %1372 = vst.msk [vmem:[#allocation3 + $0x68] sm:$0xff] %vm1358, %v1355
        %1373 = vst.msk [vmem:[#allocation3 + $0x70] sm:$0xff] %vm1358, %v1356
        %1374 = vst.msk [vmem:[#allocation3 + $0x78] sm:$0xff] %vm1358, %v1357
        %v1375 = vld [vmem:[#allocation2] sm:$0xff]
        %v1376 = vld [vmem:[#allocation2 + $0x8] sm:$0xff]
        %v1377 = vld [vmem:[#allocation2 + $0x10] sm:$0xff]
        %v1378 = vld [vmem:[#allocation2 + $0x18] sm:$0xff]
        %v1379 = vld [vmem:[#allocation2 + $0x20] sm:$0xff]
        %v1380 = vld [vmem:[#allocation2 + $0x28] sm:$0xff]
        %v1381 = vld [vmem:[#allocation2 + $0x30] sm:$0xff]
        %v1382 = vld [vmem:[#allocation2 + $0x38] sm:$0xff]
        %v1383 = vld [vmem:[#allocation2 + $0x40] sm:$0xff]
        %v1384 = vld [vmem:[#allocation2 + $0x48] sm:$0xff]
        %v1385 = vld [vmem:[#allocation2 + $0x50] sm:$0xff]
        %v1386 = vld [vmem:[#allocation2 + $0x58] sm:$0xff]
        %v1387 = vld [vmem:[#allocation2 + $0x60] sm:$0xff]
        %v1388 = vld [vmem:[#allocation2 + $0x68] sm:$0xff]
        %v1389 = vld [vmem:[#allocation2 + $0x70] sm:$0xff]
        %v1390 = vld [vmem:[#allocation2 + $0x78] sm:$0xff]
        %v1391 = vsel %vm1310, %v770, %v1375
        %v1392 = vsel %vm1311, %v775, %v1376
        %v1393 = vsel %vm1312, %v780, %v1377
        %v1394 = vsel %vm1313, %v785, %v1378
        %v1395 = vsel %vm1314, %v790, %v1379
        %v1396 = vsel %vm1315, %v795, %v1380
        %v1397 = vsel %vm1316, %v800, %v1381
        %v1398 = vsel %vm1317, %v805, %v1382
        %v1399 = vsel %vm1318, %v810, %v1383
        %v1400 = vsel %vm1319, %v815, %v1384
        %v1401 = vsel %vm1320, %v820, %v1385
        %v1402 = vsel %vm1321, %v825, %v1386
        %v1403 = vsel %vm1322, %v830, %v1387
        %v1404 = vsel %vm1323, %v835, %v1388
        %v1405 = vsel %vm1324, %v840, %v1389
        %v1406 = vsel %vm1325, %v845, %v1390
        %1407 = vst.msk [vmem:[#allocation2] sm:$0xff] %vm1358, %v1391
        %1408 = vst.msk [vmem:[#allocation2 + $0x8] sm:$0xff] %vm1358, %v1392
        %1409 = vst.msk [vmem:[#allocation2 + $0x10] sm:$0xff] %vm1358, %v1393
        %1410 = vst.msk [vmem:[#allocation2 + $0x18] sm:$0xff] %vm1358, %v1394
        %1411 = vst.msk [vmem:[#allocation2 + $0x20] sm:$0xff] %vm1358, %v1395
        %1412 = vst.msk [vmem:[#allocation2 + $0x28] sm:$0xff] %vm1358, %v1396
        %1413 = vst.msk [vmem:[#allocation2 + $0x30] sm:$0xff] %vm1358, %v1397
        %1414 = vst.msk [vmem:[#allocation2 + $0x38] sm:$0xff] %vm1358, %v1398
        %1415 = vst.msk [vmem:[#allocation2 + $0x40] sm:$0xff] %vm1358, %v1399
        %1416 = vst.msk [vmem:[#allocation2 + $0x48] sm:$0xff] %vm1358, %v1400
        %1417 = vst.msk [vmem:[#allocation2 + $0x50] sm:$0xff] %vm1358, %v1401
        %1418 = vst.msk [vmem:[#allocation2 + $0x58] sm:$0xff] %vm1358, %v1402
        %1419 = vst.msk [vmem:[#allocation2 + $0x60] sm:$0xff] %vm1358, %v1403
        %1420 = vst.msk [vmem:[#allocation2 + $0x68] sm:$0xff] %vm1358, %v1404
        %1421 = vst.msk [vmem:[#allocation2 + $0x70] sm:$0xff] %vm1358, %v1405
        %1422 = vst.msk [vmem:[#allocation2 + $0x78] sm:$0xff] %vm1358, %v1406
        %p1423 = scmp.eq.s32.totalorder %s32, 1
        // Predicated region
        $region41: #{tpu_custom_call.1} parent=27 // pred_check
          %p1424 = pneg %p1423
        $region42: #{tpu_custom_call.1} parent=27 // pred_check_branch
          %1426 = sbr.rel (%p1424) target = $region44
        $region43: #{tpu_custom_call.1} parent=27 // pred_region
          %v1427 = vld [vmem:[#allocation2] sm:$0xff]
          %v1428 = vld [vmem:[#allocation2 + $0x8] sm:$0xff]
          %v1429 = vld [vmem:[#allocation2 + $0x10] sm:$0xff]
          %v1430 = vld [vmem:[#allocation2 + $0x18] sm:$0xff]
          %v1431 = vld [vmem:[#allocation2 + $0x20] sm:$0xff]
          %v1432 = vld [vmem:[#allocation2 + $0x28] sm:$0xff]
          %v1433 = vld [vmem:[#allocation2 + $0x30] sm:$0xff]
          %v1434 = vld [vmem:[#allocation2 + $0x38] sm:$0xff]
          %v1435 = vld [vmem:[#allocation2 + $0x40] sm:$0xff]
          %v1436 = vld [vmem:[#allocation2 + $0x48] sm:$0xff]
          %v1437 = vld [vmem:[#allocation2 + $0x50] sm:$0xff]
          %v1438 = vld [vmem:[#allocation2 + $0x58] sm:$0xff]
          %v1439 = vld [vmem:[#allocation2 + $0x60] sm:$0xff]
          %v1440 = vld [vmem:[#allocation2 + $0x68] sm:$0xff]
          %v1441 = vld [vmem:[#allocation2 + $0x70] sm:$0xff]
          %v1442 = vld [vmem:[#allocation2 + $0x78] sm:$0xff]
          %v1443 = vlaneseq
          %v1444 = vshrl.u32 %v1443, 7
          %v1445 = vadd.s32 %v1444, 8
          %v1446 = vadd.s32 %v1444, 16
          %v1447 = vadd.s32 %v1444, 24
          %v1448 = vadd.s32 %v1444, 32
          %v1449 = vadd.s32 %v1444, 40
          %v1450 = vadd.s32 %v1444, 48
          %v1451 = vadd.s32 %v1444, 56
          %v1452 = vadd.s32 %v1444, 64
          %v1453 = vadd.s32 %v1444, 72
          %v1454 = vadd.s32 %v1444, 80
          %v1455 = vadd.s32 %v1444, 88
          %v1456 = vadd.s32 %v1444, 96
          %v1457 = vadd.s32 %v1444, 104
          %v1458 = vadd.s32 %v1444, 112
          %v1459 = vadd.s32 %v1444, 120
          %vm1460 = vcmp.eq.s32.totalorder %v1444, %v756
          %vm1461 = vcmp.eq.s32.totalorder %v1445, %v756
          %vm1462 = vcmp.eq.s32.totalorder %v1446, %v756
          %vm1463 = vcmp.eq.s32.totalorder %v1447, %v756
          %vm1464 = vcmp.eq.s32.totalorder %v1448, %v756
          %vm1465 = vcmp.eq.s32.totalorder %v1449, %v756
          %vm1466 = vcmp.eq.s32.totalorder %v1450, %v756
          %vm1467 = vcmp.eq.s32.totalorder %v1451, %v756
          %vm1468 = vcmp.eq.s32.totalorder %v1452, %v756
          %vm1469 = vcmp.eq.s32.totalorder %v1453, %v756
          %vm1470 = vcmp.eq.s32.totalorder %v1454, %v756
          %vm1471 = vcmp.eq.s32.totalorder %v1455, %v756
          %vm1472 = vcmp.eq.s32.totalorder %v1456, %v756
          %vm1473 = vcmp.eq.s32.totalorder %v1457, %v756
          %vm1474 = vcmp.eq.s32.totalorder %v1458, %v756
          %vm1475 = vcmp.eq.s32.totalorder %v1459, %v756
          %1477 = vset.pattern.permute.xlu0 0
          %1478 = vperm.xlu0 %1477, %v1427
          %v1479 = vpop.permute.xlu0 %1478
          %1482 = vset.pattern.permute.xlu0 0
          %1483 = vperm.xlu0 %1482, %v1428
          %v1484 = vpop.permute.xlu0 %1483
          %1487 = vset.pattern.permute.xlu0 0
          %1488 = vperm.xlu0 %1487, %v1429
          %v1489 = vpop.permute.xlu0 %1488
          %1492 = vset.pattern.permute.xlu0 0
          %1493 = vperm.xlu0 %1492, %v1430
          %v1494 = vpop.permute.xlu0 %1493
          %1497 = vset.pattern.permute.xlu0 0
          %1498 = vperm.xlu0 %1497, %v1431
          %v1499 = vpop.permute.xlu0 %1498
          %1502 = vset.pattern.permute.xlu0 0
          %1503 = vperm.xlu0 %1502, %v1432
          %v1504 = vpop.permute.xlu0 %1503
          %1507 = vset.pattern.permute.xlu0 0
          %1508 = vperm.xlu0 %1507, %v1433
          %v1509 = vpop.permute.xlu0 %1508
          %1512 = vset.pattern.permute.xlu0 0
          %1513 = vperm.xlu0 %1512, %v1434
          %v1514 = vpop.permute.xlu0 %1513
          %1517 = vset.pattern.permute.xlu0 0
          %1518 = vperm.xlu0 %1517, %v1435
          %v1519 = vpop.permute.xlu0 %1518
          %1522 = vset.pattern.permute.xlu0 0
          %1523 = vperm.xlu0 %1522, %v1436
          %v1524 = vpop.permute.xlu0 %1523
          %1527 = vset.pattern.permute.xlu0 0
          %1528 = vperm.xlu0 %1527, %v1437
          %v1529 = vpop.permute.xlu0 %1528
          %1532 = vset.pattern.permute.xlu0 0
          %1533 = vperm.xlu0 %1532, %v1438
          %v1534 = vpop.permute.xlu0 %1533
          %1537 = vset.pattern.permute.xlu0 0
          %1538 = vperm.xlu0 %1537, %v1439
          %v1539 = vpop.permute.xlu0 %1538
          %1542 = vset.pattern.permute.xlu0 0
          %1543 = vperm.xlu0 %1542, %v1440
          %v1544 = vpop.permute.xlu0 %1543
          %1547 = vset.pattern.permute.xlu0 0
          %1548 = vperm.xlu0 %1547, %v1441
          %v1549 = vpop.permute.xlu0 %1548
          %1552 = vset.pattern.permute.xlu0 0
          %1553 = vperm.xlu0 %1552, %v1442
          %v1554 = vpop.permute.xlu0 %1553
          %v1556 = vsel %vm1460, %v1479, 0.0
          %v1557 = vsel %vm1461, %v1484, 0.0
          %v1558 = vsel %vm1462, %v1489, 0.0
          %v1559 = vsel %vm1463, %v1494, 0.0
          %v1560 = vsel %vm1464, %v1499, 0.0
          %v1561 = vsel %vm1465, %v1504, 0.0
          %v1562 = vsel %vm1466, %v1509, 0.0
          %v1563 = vsel %vm1467, %v1514, 0.0
          %v1564 = vsel %vm1468, %v1519, 0.0
          %v1565 = vsel %vm1469, %v1524, 0.0
          %v1566 = vsel %vm1470, %v1529, 0.0
          %v1567 = vsel %vm1471, %v1534, 0.0
          %v1568 = vsel %vm1472, %v1539, 0.0
          %v1569 = vsel %vm1473, %v1544, 0.0
          %v1570 = vsel %vm1474, %v1549, 0.0
          %v1571 = vsel %vm1475, %v1554, 0.0
          %v1572 = vadd.f32 %v1556, %v1557
          %v1573 = vadd.f32 %v1572, %v1558
          %v1574 = vadd.f32 %v1573, %v1559
          %v1575 = vadd.f32 %v1574, %v1560
          %v1576 = vadd.f32 %v1575, %v1561
          %v1577 = vadd.f32 %v1576, %v1562
          %v1578 = vadd.f32 %v1577, %v1563
          %v1579 = vadd.f32 %v1578, %v1564
          %v1580 = vadd.f32 %v1579, %v1565
          %v1581 = vadd.f32 %v1580, %v1566
          %v1582 = vadd.f32 %v1581, %v1567
          %v1583 = vadd.f32 %v1582, %v1568
          %v1584 = vadd.f32 %v1583, %v1569
          %v1585 = vadd.f32 %v1584, %v1570
          %v1586 = vadd.f32 %v1585, %v1571
          %v1587 = vrot.slane %v1586, 4
          %v1588 = vadd.f32 %v1586, %v1587
          %v1589 = vrot.slane %v1588, 2
          %v1590 = vadd.f32 %v1588, %v1589
          %v1591 = vrot.slane %v1590, 1
          %v1592 = vadd.f32 %v1590, %v1591
          %1593 = vst [vmem:[%s257] sm:$0x1] %v1592
          %v1594 = vld [vmem:[#allocation3] sm:$0xff]
          %v1595 = vld [vmem:[#allocation3 + $0x8] sm:$0xff]
          %v1596 = vld [vmem:[#allocation3 + $0x10] sm:$0xff]
          %v1597 = vld [vmem:[#allocation3 + $0x18] sm:$0xff]
          %v1598 = vld [vmem:[#allocation3 + $0x20] sm:$0xff]
          %v1599 = vld [vmem:[#allocation3 + $0x28] sm:$0xff]
          %v1600 = vld [vmem:[#allocation3 + $0x30] sm:$0xff]
          %v1601 = vld [vmem:[#allocation3 + $0x38] sm:$0xff]
          %v1602 = vld [vmem:[#allocation3 + $0x40] sm:$0xff]
          %v1603 = vld [vmem:[#allocation3 + $0x48] sm:$0xff]
          %v1604 = vld [vmem:[#allocation3 + $0x50] sm:$0xff]
          %v1605 = vld [vmem:[#allocation3 + $0x58] sm:$0xff]
          %v1606 = vld [vmem:[#allocation3 + $0x60] sm:$0xff]
          %v1607 = vld [vmem:[#allocation3 + $0x68] sm:$0xff]
          %v1608 = vld [vmem:[#allocation3 + $0x70] sm:$0xff]
          %v1609 = vld [vmem:[#allocation3 + $0x78] sm:$0xff]
          %1610 = vset.pattern.permute.xlu0 0
          %1611 = vperm.xlu0 %1610, %v1594
          %v1612 = vpop.permute.xlu0 %1611
          %1613 = vset.pattern.permute.xlu0 0
          %1614 = vperm.xlu0 %1613, %v1595
          %v1615 = vpop.permute.xlu0 %1614
          %1616 = vset.pattern.permute.xlu0 0
          %1617 = vperm.xlu0 %1616, %v1596
          %v1618 = vpop.permute.xlu0 %1617
          %1619 = vset.pattern.permute.xlu0 0
          %1620 = vperm.xlu0 %1619, %v1597
          %v1621 = vpop.permute.xlu0 %1620
          %1622 = vset.pattern.permute.xlu0 0
          %1623 = vperm.xlu0 %1622, %v1598
          %v1624 = vpop.permute.xlu0 %1623
          %1625 = vset.pattern.permute.xlu0 0
          %1626 = vperm.xlu0 %1625, %v1599
          %v1627 = vpop.permute.xlu0 %1626
          %1628 = vset.pattern.permute.xlu0 0
          %1629 = vperm.xlu0 %1628, %v1600
          %v1630 = vpop.permute.xlu0 %1629
          %1631 = vset.pattern.permute.xlu0 0
          %1632 = vperm.xlu0 %1631, %v1601
          %v1633 = vpop.permute.xlu0 %1632
          %1634 = vset.pattern.permute.xlu0 0
          %1635 = vperm.xlu0 %1634, %v1602
          %v1636 = vpop.permute.xlu0 %1635
          %1637 = vset.pattern.permute.xlu0 0
          %1638 = vperm.xlu0 %1637, %v1603
          %v1639 = vpop.permute.xlu0 %1638
          %1640 = vset.pattern.permute.xlu0 0
          %1641 = vperm.xlu0 %1640, %v1604
          %v1642 = vpop.permute.xlu0 %1641
          %1643 = vset.pattern.permute.xlu0 0
          %1644 = vperm.xlu0 %1643, %v1605
          %v1645 = vpop.permute.xlu0 %1644
          %1646 = vset.pattern.permute.xlu0 0
          %1647 = vperm.xlu0 %1646, %v1606
          %v1648 = vpop.permute.xlu0 %1647
          %1649 = vset.pattern.permute.xlu0 0
          %1650 = vperm.xlu0 %1649, %v1607
          %v1651 = vpop.permute.xlu0 %1650
          %1652 = vset.pattern.permute.xlu0 0
          %1653 = vperm.xlu0 %1652, %v1608
          %v1654 = vpop.permute.xlu0 %1653
          %1655 = vset.pattern.permute.xlu0 0
          %1656 = vperm.xlu0 %1655, %v1609
          %v1657 = vpop.permute.xlu0 %1656
          %v1658 = vsel %vm1460, %v1612, 0
          %v1659 = vsel %vm1461, %v1615, 0
          %v1660 = vsel %vm1462, %v1618, 0
          %v1661 = vsel %vm1463, %v1621, 0
          %v1662 = vsel %vm1464, %v1624, 0
          %v1663 = vsel %vm1465, %v1627, 0
          %v1664 = vsel %vm1466, %v1630, 0
          %v1665 = vsel %vm1467, %v1633, 0
          %v1666 = vsel %vm1468, %v1636, 0
          %v1667 = vsel %vm1469, %v1639, 0
          %v1668 = vsel %vm1470, %v1642, 0
          %v1669 = vsel %vm1471, %v1645, 0
          %v1670 = vsel %vm1472, %v1648, 0
          %v1671 = vsel %vm1473, %v1651, 0
          %v1672 = vsel %vm1474, %v1654, 0
          %v1673 = vsel %vm1475, %v1657, 0
          %v1674 = vadd.s32 %v1658, %v1662
          %v1675 = vadd.s32 %v1659, %v1663
          %v1676 = vadd.s32 %v1660, %v1664
          %v1677 = vadd.s32 %v1661, %v1665
          %v1678 = vadd.s32 %v1674, %v1666
          %v1679 = vadd.s32 %v1675, %v1667
          %v1680 = vadd.s32 %v1676, %v1668
          %v1681 = vadd.s32 %v1677, %v1669
          %v1682 = vadd.s32 %v1678, %v1670
          %v1683 = vadd.s32 %v1679, %v1671
          %v1684 = vadd.s32 %v1680, %v1672
          %v1685 = vadd.s32 %v1681, %v1673
          %v1686 = vadd.s32 %v1682, %v1683
          %v1687 = vadd.s32 %v1684, %v1685
          %v1688 = vadd.s32 %v1686, %v1687
          %v1689 = vrot.slane %v1688, 4
          %v1690 = vadd.s32 %v1688, %v1689
          %v1691 = vrot.slane %v1690, 2
          %v1692 = vadd.s32 %v1690, %v1691
          %v1693 = vrot.slane %v1692, 1
          %v1694 = vadd.s32 %v1692, %v1693
          %1695 = vst [vmem:[%s263] sm:$0x1] %v1694
        $region44: #{tpu_custom_call.1} parent=27 // pred_fallthru
          _
        %s1696 = sand.u32 %s103, 1
        %s1697 = scalar_lea.sflag [#allocation6], %s1696
        %s1698 = sand.u32 %s103, 1
        %s1699 = scalar_lea.vmem [#allocation9], %s1698
        %s1700 = sand.u32 %s129, 1
        %s1701 = scalar_lea.sflag [#allocation11], %s1700
        %s1702 = sand.u32 %s129, 1
        %s1703 = scalar_lea.vmem [#allocation10], %s1702
        // Predicated region
        $region45: #{tpu_custom_call.1} parent=27 // pred_check
          %p1704 = pneg %p113
        $region46: #{tpu_custom_call.1} parent=27 // pred_check_branch
          %1706 = sbr.rel (%p1704) target = $region48
        $region47: #{tpu_custom_call.1} parent=27 // pred_region
          %1708 = vsyncadd %s1697, 0
          %s1709 = scalar_lea.hbm %s2, %s31
          %s1711 = sshll.u32 %s1699, 4
          %s1712 = int_to_ptr.vmem [resolvable:$true] %s1711
          %s1713 = sshll.u32 %s1709, 4
          %s1714 = int_to_ptr.hbm [resolvable:$true] %s1713
          %1716 = dma.vmem_to_hbm [thread:$0]  %s1712, 16, %s1714, %s1697
        $region48: #{tpu_custom_call.1} parent=27 // pred_fallthru
          _
        // Predicated region
        $region49: #{tpu_custom_call.1} parent=27 // pred_check
          %p1717 = pneg %p139
        $region50: #{tpu_custom_call.1} parent=27 // pred_check_branch
          %1719 = sbr.rel (%p1717) target = $region52
        $region51: #{tpu_custom_call.1} parent=27 // pred_region
          %1721 = vsyncadd %s1701, 0
          %s1722 = scalar_lea.hbm %s3, %s31
          %s1724 = sshll.u32 %s1703, 4
          %s1725 = int_to_ptr.vmem [resolvable:$true] %s1724
          %s1726 = sshll.u32 %s1722, 4
          %s1727 = int_to_ptr.hbm [resolvable:$true] %s1726
          %1729 = dma.vmem_to_hbm [thread:$0]  %s1725, 16, %s1727, %s1701
        $region52: #{tpu_custom_call.1} parent=27 // pred_fallthru
          _
      $region28: #{tpu_custom_call.1} parent=5 // pred_fallthru
        _
      %p1730 = scmp.le.s32.totalorder 2, %s22
      // Predicated region
      $region53: #{tpu_custom_call.1} parent=5 // pred_check
        %p1731 = pneg %p1730
      $region54: #{tpu_custom_call.1} parent=5 // pred_check_branch
        %1733 = sbr.rel (%p1731) target = $region56
      $region55: #{tpu_custom_call.1} parent=5 // pred_region
        %s1734 = ssub.s32 %s22, 2
        // Predicated region
        $region57: #{tpu_custom_call.1} parent=55 // pred_check
          %p1735 = pneg %p119
        $region58: #{tpu_custom_call.1} parent=55 // pred_check_branch
          %1737 = sbr.rel (%p1735) target = $region60
        $region59: #{tpu_custom_call.1} parent=55 // pred_region
          %s1738 = sand.u32 %s104, 1
          %s1739 = scalar_lea.sflag [#allocation6], %s1738
          %s1740 = sand.u32 %s104, 1
          %s1741 = scalar_lea.vmem [#allocation9], %s1740
          %1743 = dma.done %s1739, 16
        $region60: #{tpu_custom_call.1} parent=55 // pred_fallthru
          _
        // Predicated region
        $region61: #{tpu_custom_call.1} parent=55 // pred_check
          %p1744 = pneg %p145
        $region62: #{tpu_custom_call.1} parent=55 // pred_check_branch
          %1746 = sbr.rel (%p1744) target = $region64
        $region63: #{tpu_custom_call.1} parent=55 // pred_region
          %s1747 = sand.u32 %s130, 1
          %s1748 = scalar_lea.sflag [#allocation11], %s1747
          %s1749 = sand.u32 %s130, 1
          %s1750 = scalar_lea.vmem [#allocation10], %s1749
          %1752 = dma.done %s1748, 16
        $region64: #{tpu_custom_call.1} parent=55 // pred_fallthru
          _
      $region56: #{tpu_custom_call.1} parent=5 // pred_fallthru
        _
    $region6: #{tpu_custom_call.1} parent=1 // loop_footer
      %s26 = sadd.s32 1, %s22
    $region7: #{tpu_custom_call.1} parent=1 // loop_footer_branch
      %21 = sbr.rel target = $region3
    $region8: #{tpu_custom_call.1} parent=1 // loop_exit
      _
    %1753 = vsyncpa [#allocation5], 1
    %s1754 = scalar_lea.sflag [#allocation5], 1
    %1755 = vsyncpa %s1754, 1
    %1756 = vsyncpa [#allocation8], 1
    %s1757 = scalar_lea.sflag [#allocation8], 1
    %1758 = vsyncpa %s1757, 1
    %1759 = vsyncpa [#allocation6], 1
    %s1760 = scalar_lea.sflag [#allocation6], 1
    %1761 = vsyncpa %s1760, 1
    %1762 = vsyncpa [#allocation11], 1
    %s1763 = scalar_lea.sflag [#allocation11], 1
    %1764 = vsyncpa %s1763, 1

</llo_original>
